<compile_context>
chip_gen: v5e
topology: v5e:2x2
jax: 0.10.0
libtpu: 0.0.40
codegen_flags: <defaults>
</compile_context>

<pallas_src>
import functools

import jax
import jax.numpy as jnp
from jax.experimental import pallas as pl
from jax.experimental.pallas import tpu as pltpu


_NEG_BIG = -1e30          # finite "-inf": exp() underflows to exactly 0
_MIB = 1024 * 1024


# ---------------------------------------------------------------------------
# small helpers
# ---------------------------------------------------------------------------
def _vmem_limit_bytes():
    """Generation-aware VMEM request, leaving headroom for compiler scratch.

    v7x (64 MiB physical) -> 48 MiB; v5e/v6e (128 MiB) -> 100 MiB.
    """
    try:
        cap = pltpu.get_tpu_info().vmem_capacity_bytes
    except Exception:                      # conservative fallback, safe everywhere
        cap = 64 * _MIB
    return int(min(cap - 16 * _MIB, 100 * _MIB))


def _spec(block_shape, index_map, buffers=None):
    """BlockSpec, optionally with an explicit buffer count (pl.Buffered)."""
    if buffers is None:
        return pl.BlockSpec(block_shape, index_map)
    return pl.BlockSpec(block_shape, index_map, pipeline_mode=pl.Buffered(buffers))


def _try_single_buffered(build):
    """Run build(1): grid-invariant blocks single-buffered (halves their VMEM,
    important on v7x's 64 MiB).  Fall back to default double buffering if this
    Pallas/Mosaic version rejects pipeline_mode=Buffered(1)."""
    try:
        return jax.block_until_ready(build(1))
    except Exception:   # pragma: no cover - depends on jax/libtpu version
        return jax.block_until_ready(build(None))


def _attn_vmem_bytes(t, hp, wp, cq, c, itemsize):
    """Rough per-step VMEM footprint of the attention kernel for row block t."""
    streamed = (3 * t * wp * cq + 3 * t * wp * c) * itemsize * 2   # double-buffered tiles
    resident = wp * hp * (cq + c) * itemsize                       # K^T / V^T (single buf)
    temps = (3 * t * wp * (hp + wp) + 2 * t * wp * c) * 4          # live f32 intermediates
    return streamed + resident + temps


def _pick_th(B, hp, wp, cq, c, itemsize, vmem_limit, sub):
    """Largest legal query-row block that fits the VMEM budget.

    `th` must be a multiple of the sublane granule (it is the second-minor dim
    of the W-major Q / output blocks) and must divide the padded height.
    """
    budget = (3 * vmem_limit) // 4          # leave headroom for compiler scratch
    cands = [t for t in range(sub, hp + 1, sub) if hp % t == 0]
    fits = [t for t in cands if _attn_vmem_bytes(t, hp, wp, cq, c, itemsize) <= budget]
    if not fits:
        fits = cands[:1]                    # smallest legal tile; compiler copes
    th = max(fits)
    # v7x has 2 TensorCores: keep >= 2 grid points on the parallel axes if we can.
    if B * (hp // th) < 2:
        smaller = [t for t in fits if hp // t >= 2]
        if smaller:
            th = max(smaller)
    return th


# ---------------------------------------------------------------------------
# Kernel 1: fused 1x1-conv projections  -> three separate q / k / v outputs
# ---------------------------------------------------------------------------
def _proj_kernel(x_ref, w_ref, b_ref, q_ref, k_ref, v_ref, *, cq):
    y = (jnp.dot(x_ref[...], w_ref[...], preferred_element_type=jnp.float32)
         + b_ref[...])
    q_ref[...] = y[:, :cq].astype(q_ref.dtype)
    k_ref[...] = y[:, cq:2 * cq].astype(k_ref.dtype)
    v_ref[...] = y[:, 2 * cq:].astype(v_ref.dtype)


def _project(x_flat, w_all, b_all, cq, *, out_dtype, tm, sub, vmem_limit):
    n, c = x_flat.shape
    co = w_all.shape[1]
    tm = max(sub, min(tm, pl.cdiv(n, sub) * sub))   # never tile bigger than the input
    n_pad = pl.cdiv(n, tm) * tm
    if n_pad != n:
        x_flat = jnp.pad(x_flat, ((0, n_pad - n), (0, 0)))

    kernel = functools.partial(_proj_kernel, cq=cq)

    def build(res):
        return pl.pallas_call(
            kernel,
            grid=(n_pad // tm,),
            in_specs=[
                pl.BlockSpec((tm, c), lambda i: (i, 0)),    # pixel tile (pipelined)
                _spec((c, co), lambda i: (0, 0), res),      # fused weights (resident)
                _spec((1, co), lambda i: (0, 0), res),      # fused bias (resident)
            ],
            out_specs=(
                pl.BlockSpec((tm, cq), lambda i: (i, 0)),
                pl.BlockSpec((tm, cq), lambda i: (i, 0)),
                pl.BlockSpec((tm, c), lambda i: (i, 0)),
            ),
            out_shape=(
                jax.ShapeDtypeStruct((n_pad, cq), out_dtype),
                jax.ShapeDtypeStruct((n_pad, cq), out_dtype),
                jax.ShapeDtypeStruct((n_pad, c), out_dtype),
            ),
            compiler_params=pltpu.CompilerParams(
                dimension_semantics=("parallel",),
                vmem_limit_bytes=vmem_limit),
        )(x_flat, w_all, b_all)

    q, k, v = _try_single_buffered(build)
    return q[:n], k[:n], v[:n]


# ---------------------------------------------------------------------------
# Kernel 2: criss-cross attention over a block of TH query rows
# ---------------------------------------------------------------------------
def _cc_attn_kernel(q_ref, qt_ref, k_ref, kt_ref, v_ref, vt_ref, gamma_ref,
                    out1_ref, out2_ref, *, h_valid, w_valid):
    q = q_ref[0]       # (TH, Wp, Cq)  H-major query rows
    qt = qt_ref[0]     # (Wp, TH, Cq)  W-major query rows
    k = k_ref[0]       # (TH, Wp, Cq)  H-major key rows (row direction)
    kt = kt_ref[0]     # (Wp, Hp, Cq)  W-major full keys (column direction)
    v = v_ref[0]       # (TH, Wp, C)   H-major value rows (row direction)
    vt = vt_ref[0]     # (Wp, Hp, C)   W-major full values (column direction)

    th = q.shape[0]
    wp = q.shape[1]
    hp = kt.shape[1]
    row0 = pl.program_id(1) * th

    # column-direction energy (W-batched MXU contraction), kept W-major:
    #   eH_t[w, h, g] = sum_c Q[h, w, c] * K[g, w, c]
    eH_t = jnp.einsum('whc,wgc->whg', qt, kt,
                      preferred_element_type=jnp.float32)            # (Wp, TH, Hp)
    h_idx = jax.lax.broadcasted_iota(jnp.int32, (th, hp), 0) + row0
    g_idx = jax.lax.broadcasted_iota(jnp.int32, (th, hp), 1)
    mask_h = h_idx == g_idx                     # PyTorch INF(): -inf on g == h
    if hp > h_valid:                            # padded key rows contribute nothing
        mask_h = mask_h | (g_idx >= h_valid)
    eH_t = jnp.where(mask_h[None, :, :], _NEG_BIG, eH_t)

    # row-direction energy (H-batched MXU contraction), H-major:
    #   eW[h, w, w'] = sum_c Q[h, w, c] * K[h, w', c]
    eW = jnp.einsum('hwc,hvc->hwv', q, k,
                    preferred_element_type=jnp.float32)              # (TH, Wp, Wp)
    if wp > w_valid:                            # padded key columns
        w_ids = jax.lax.broadcasted_iota(jnp.int32, (1, 1, wp), 2)
        eW = jnp.where(w_ids >= w_valid, _NEG_BIG, eW)

    # ---- joint softmax over concat([eH, eW], -1), concat-free --------------
    # direction-local stats in each direction's native layout (no relayouts):
    mH_t = jnp.max(eH_t, axis=-1)                                    # (Wp, TH)
    pH_t = jnp.exp(eH_t - mH_t[:, :, None])                          # local-max exps
    dH_t = jnp.sum(pH_t, axis=-1)                                    # (Wp, TH)
    mW = jnp.max(eW, axis=-1)                                        # (TH, Wp)
    pW = jnp.exp(eW - mW[:, :, None])
    dW = jnp.sum(pW, axis=-1)                                        # (TH, Wp)

    # Combine the two directions' stats in H-major.  Exactly two small
    # relayouts: one (2*Wp, TH) -> (TH, 2*Wp) transpose bringing the column
    # direction's stats over, one (TH, Wp) -> (Wp, TH) transpose sending the
    # combined scale back (previously four transposes).
    hs = jnp.concatenate([mH_t, dH_t], axis=0).T                     # (TH, 2*Wp)
    mH, dH = hs[:, :wp], hs[:, wp:]
    m = jnp.maximum(mH, mW)
    cH = jnp.exp(mH - m)
    cW = jnp.exp(mW - m)
    # approx reciprocal uses the EUP slot; switch to approx=False for training.
    inv = pl.reciprocal(dH * cH + dW * cW, approx=True)              # (TH, Wp)
    sW = cW * inv                                                    # row-direction scale
    sH_t = (cH * inv).T                                              # (Wp, TH) column scale

    attH_t = (pH_t * sH_t[:, :, None]).astype(vt.dtype)              # (Wp, TH, Hp)
    attW = (pW * sW[:, :, None]).astype(v.dtype)                     # (TH, Wp, Wp)

    # column-direction output, kept W-major (recombined in the wrapper):
    #   outH_t[w, h, c] = sum_g attH[h, w, g] * V[g, w, c]
    outH_t = jnp.einsum('whg,wgc->whc', attH_t, vt,
                        preferred_element_type=jnp.float32)          # (Wp, TH, C)
    # row-direction output:
    #   outW[h, w, c] = sum_w' attW[h, w, w'] * V[h, w', c]
    outW = jnp.einsum('hwv,hvc->hwc', attW, v,
                      preferred_element_type=jnp.float32)            # (TH, Wp, C)

    gamma = gamma_ref[0, 0]
    out1_ref[0] = (gamma * outW).astype(out1_ref.dtype)              # H-major partial
    out2_ref[0] = (gamma * outH_t).astype(out2_ref.dtype)            # W-major partial


# ---------------------------------------------------------------------------
# wrapper
# ---------------------------------------------------------------------------
def cc_module_pallas(x_nchw, params, *, compute_dtype=jnp.bfloat16, th=None):
    wq, bq, wk, bk, wv, bv, gamma = params
    B, C, H, W = x_nchw.shape
    Cq = wq.shape[0]

    itemsize = jnp.dtype(compute_dtype).itemsize
    sub = 16 if itemsize == 2 else 8            # sublane granule of compute_dtype
    Hp = pl.cdiv(H, sub) * sub
    Wp = pl.cdiv(W, sub) * sub
    vmem_limit = _vmem_limit_bytes()

    x_nhwc = jnp.transpose(x_nchw, (0, 2, 3, 1)).astype(jnp.float32)
    if (Hp, Wp) != (H, W):
        x_nhwc = jnp.pad(x_nhwc, ((0, 0), (0, Hp - H), (0, Wp - W), (0, 0)))
    x_flat = x_nhwc.reshape(B * Hp * Wp, C)

    # ---- kernel 1: fused 1x1-conv projections, emitted directly as q/k/v ----
    w_all = jnp.concatenate([wq.T, wk.T, wv.T], axis=1).astype(jnp.float32)
    b_all = jnp.concatenate([bq, bk, bv]).reshape(1, 2 * Cq + C).astype(jnp.float32)
    tm = 2048 if vmem_limit >= 80 * _MIB else 1024    # bigger pixel tiles on v5e/v6e
    qf, kf, vf = _project(x_flat, w_all, b_all, Cq, out_dtype=compute_dtype,
                          tm=tm, sub=sub, vmem_limit=vmem_limit)
    q4 = qf.reshape(B, Hp, Wp, Cq)
    k4 = kf.reshape(B, Hp, Wp, Cq)
    v4 = vf.reshape(B, Hp, Wp, C)

    # W-major copies for the column-direction contractions (once, in XLA; half
    # the bytes in bf16)
    qt = jnp.transpose(q4, (0, 2, 1, 3))     # (B, Wp, Hp, Cq)
    kt = jnp.transpose(k4, (0, 2, 1, 3))     # (B, Wp, Hp, Cq)
    vt = jnp.transpose(v4, (0, 2, 1, 3))     # (B, Wp, Hp, C)

    if th is None:
        th = _pick_th(B, Hp, Wp, Cq, C, itemsize, vmem_limit, sub)
    n_hb = Hp // th
    gamma2 = jnp.reshape(gamma, (1, 1)).astype(jnp.float32)

    kernel = functools.partial(_cc_attn_kernel, h_valid=H, w_valid=W)

    def build(res):
        return pl.pallas_call(
            kernel,
            grid_spec=pltpu.PrefetchScalarGridSpec(
                num_scalar_prefetch=0,
                grid=(B, n_hb),
                in_specs=[
                    pl.BlockSpec((1, th, Wp, Cq), lambda b, j: (b, j, 0, 0)),  # Q rows
                    pl.BlockSpec((1, Wp, th, Cq), lambda b, j: (b, 0, j, 0)),  # Q^T rows
                    pl.BlockSpec((1, th, Wp, Cq), lambda b, j: (b, j, 0, 0)),  # K rows
                    _spec((1, Wp, Hp, Cq), lambda b, j: (b, 0, 0, 0), res),    # K^T (j-invariant)
                    pl.BlockSpec((1, th, Wp, C), lambda b, j: (b, j, 0, 0)),   # V rows
                    _spec((1, Wp, Hp, C), lambda b, j: (b, 0, 0, 0), res),     # V^T (j-invariant)
                    pl.BlockSpec(memory_space=pltpu.MemorySpace.SMEM),         # gamma
                ],
                out_specs=(
                    pl.BlockSpec((1, th, Wp, C), lambda b, j: (b, j, 0, 0)),   # H-major
                    pl.BlockSpec((1, Wp, th, C), lambda b, j: (b, 0, j, 0)),   # W-major
                ),
            ),
            out_shape=(
                jax.ShapeDtypeStruct((B, Hp, Wp, C), compute_dtype),
                jax.ShapeDtypeStruct((B, Wp, Hp, C), compute_dtype),
            ),
            compiler_params=pltpu.CompilerParams(
                dimension_semantics=("parallel", "parallel"),
                vmem_limit_bytes=vmem_limit),
        )(q4, qt, k4, kt, v4, vt, gamma2)

    out1, out2 = _try_single_buffered(build)

    # out = gamma*(outH + outW) + x.  out1 = gamma*outW (B,Hp,Wp,C, H-major),
    # out2 = gamma*outH (B,Wp,Hp,C, W-major).  Residual + combine here so the
    # add fuses with the transposes we need anyway.
    out = (jnp.transpose(out1[:, :H, :W].astype(jnp.float32), (0, 3, 1, 2))
           + jnp.transpose(out2[:, :W, :H].astype(jnp.float32), (0, 3, 2, 1))
           + x_nchw.astype(jnp.float32))
    return out.astype(x_nchw.dtype)


# ---------------------------------------------------------------------------
# Pure-JAX reference mirroring the PyTorch forward (NCHW)
# ---------------------------------------------------------------------------
def cc_module_reference(x_nchw, params):
    wq, bq, wk, bk, wv, bv, gamma = params
    B, C, H, W = x_nchw.shape

    def conv1x1(x, w, b):
        return jnp.einsum('bchw,oc->bohw', x, w) + b[None, :, None, None]

    q = conv1x1(x_nchw, wq, bq)
    k = conv1x1(x_nchw, wk, bk)
    v = conv1x1(x_nchw, wv, bv)

    energy_H = jnp.einsum('bchw,bcgw->bhwg', q, k)
    mask = jnp.eye(H, dtype=bool)[None, :, None, :]
    energy_H = jnp.where(mask, -jnp.inf, energy_H)
    energy_W = jnp.einsum('bchw,bchv->bhwv', q, k)

    att = jax.nn.softmax(jnp.concatenate([energy_H, energy_W], axis=-1), axis=-1)
    attH = att[..., :H]
    attW = att[..., H:]

    outH = jnp.einsum('bcgw,bhwg->bchw', v, attH)
    outW = jnp.einsum('bchv,bhwv->bchw', v, attW)
    return gamma[0] * (outH + outW) + x_nchw


if __name__ == "__main__":
    key = jax.random.PRNGKey(0)
    B, C, H, W = 2, 4, 16, 16
    reduction = 2
    Cq = C // reduction

    k0, k1, k2, k3, k4, k5, k6 = jax.random.split(key, 7)
    x = jax.random.normal(k0, (B, C, H, W), jnp.float32)
    # conv weight shapes follow nn.Conv2d(in, out, 1): (out, in) after dropping 1x1 taps
    wq = 0.2 * jax.random.normal(k1, (Cq, C), jnp.float32)
    bq = 0.1 * jax.random.normal(k2, (Cq,), jnp.float32)
    wk = 0.2 * jax.random.normal(k3, (Cq, C), jnp.float32)
    bk = 0.1 * jax.random.normal(k4, (Cq,), jnp.float32)
    wv = 0.2 * jax.random.normal(k5, (C, C), jnp.float32)
    bv = 0.1 * jax.random.normal(k6, (C,), jnp.float32)
    # torch inits gamma = 0 (output == x); use a nonzero value so the attention
    # path is actually exercised / checked.
    gamma = jnp.array([0.5], jnp.float32)
    params = (wq, bq, wk, bk, wv, bv, gamma)

    ref = cc_module_reference(x, params)

    # default path: bf16 streams, f32 accumulation / softmax stats
    out_bf16 = jax.block_until_ready(cc_module_pallas(x, params))
    assert out_bf16.shape == (B, C, H, W)
    if not jnp.allclose(out_bf16, ref, atol=2e-2, rtol=2e-2):
        raise AssertionError(
            f"bf16 path mismatch vs reference, max abs err = "
            f"{float(jnp.max(jnp.abs(out_bf16 - ref)))}")

    # f32 path: tight check of the kernel math itself
    out_f32 = jax.block_until_ready(
        cc_module_pallas(x, params, compute_dtype=jnp.float32))
    if not jnp.allclose(out_f32, ref, atol=2e-3, rtol=2e-3):
        raise AssertionError(
            f"f32 path mismatch vs reference, max abs err = "
            f"{float(jnp.max(jnp.abs(out_f32 - ref)))}")

    print("KERNEL_OK")
</pallas_src>

<mosaic_0001>
module attributes {stable_mosaic.version = 11 : i64} {
  func.func @_proj_kernel(%arg0: i32, %arg1: memref<512x4xf32, #tpu.memory_space<vmem>>, %arg2: memref<4x8xf32, #tpu.memory_space<vmem>>, %arg3: memref<1x8xf32, #tpu.memory_space<vmem>>, %arg4: memref<512x2xbf16, #tpu.memory_space<vmem>>, %arg5: memref<512x2xbf16, #tpu.memory_space<vmem>>, %arg6: memref<512x4xbf16, #tpu.memory_space<vmem>>) attributes {dimension_semantics = [#tpu.dimension_semantics<parallel>], iteration_bounds = array<i64: 1>, scalar_prefetch = 0 : i64, scratch_operands = 0 : i64, tpu.core_type = #tpu.core_type<tc>, window_params = [{transform_indices = @transform_0, window_bounds = array<i64: 512, 4>}, {pipeline_mode = #tpu.pipeline_mode<synchronous>, transform_indices = @transform_1, window_bounds = array<i64: 4, 8>}, {pipeline_mode = #tpu.pipeline_mode<synchronous>, transform_indices = @transform_2, window_bounds = array<i64: 1, 8>}, {transform_indices = @transform_3, window_bounds = array<i64: 512, 2>}, {transform_indices = @transform_4, window_bounds = array<i64: 512, 2>}, {transform_indices = @transform_5, window_bounds = array<i64: 512, 4>}]} {
    %c0 = arith.constant 0 : index
    %c0_0 = arith.constant 0 : index
    %0 = vector.load %arg1[%c0, %c0_0] : memref<512x4xf32, #tpu.memory_space<vmem>>, vector<512x4xf32>
    %c0_1 = arith.constant 0 : index
    %c0_2 = arith.constant 0 : index
    %1 = vector.load %arg2[%c0_1, %c0_2] : memref<4x8xf32, #tpu.memory_space<vmem>>, vector<4x8xf32>
    %cst = arith.constant dense<0.000000e+00> : vector<512x8xf32>
    %2 = tpu.matmul %0, %1, %cst {dimension_numbers = #tpu.dot_dimension_numbers<[1], [0], [0], [1], [0, 0, 1, 1], [], []>} : vector<512x4xf32>, vector<4x8xf32>, vector<512x8xf32> -> vector<512x8xf32>
    %c0_3 = arith.constant 0 : index
    %c0_4 = arith.constant 0 : index
    %3 = vector.load %arg3[%c0_3, %c0_4] : memref<1x8xf32, #tpu.memory_space<vmem>>, vector<1x8xf32>
    %4 = vector.broadcast %3 : vector<1x8xf32> to vector<512x8xf32>
    %5 = arith.addf %2, %4 : vector<512x8xf32>
    %6 = vector.extract_strided_slice %5 {offsets = [0, 0], sizes = [512, 2], strides = [1, 1]} : vector<512x8xf32> to vector<512x2xf32>
    %7 = arith.truncf %6 : vector<512x2xf32> to vector<512x2xbf16>
    %c0_5 = arith.constant 0 : index
    %c0_6 = arith.constant 0 : index
    %8 = vector.load %arg4[%c0_5, %c0_6] : memref<512x2xbf16, #tpu.memory_space<vmem>>, vector<512x2xbf16>
    tpu.vector_store %arg4[%c0_5, %c0_6], %7 {strides = array<i32>} : memref<512x2xbf16, #tpu.memory_space<vmem>>, vector<512x2xbf16>,
    %9 = vector.extract_strided_slice %5 {offsets = [0, 2], sizes = [512, 2], strides = [1, 1]} : vector<512x8xf32> to vector<512x2xf32>
    %10 = arith.truncf %9 : vector<512x2xf32> to vector<512x2xbf16>
    %c0_7 = arith.constant 0 : index
    %c0_8 = arith.constant 0 : index
    %11 = vector.load %arg5[%c0_7, %c0_8] : memref<512x2xbf16, #tpu.memory_space<vmem>>, vector<512x2xbf16>
    tpu.vector_store %arg5[%c0_7, %c0_8], %10 {strides = array<i32>} : memref<512x2xbf16, #tpu.memory_space<vmem>>, vector<512x2xbf16>,
    %12 = vector.extract_strided_slice %5 {offsets = [0, 4], sizes = [512, 4], strides = [1, 1]} : vector<512x8xf32> to vector<512x4xf32>
    %13 = arith.truncf %12 : vector<512x4xf32> to vector<512x4xbf16>
    %c0_9 = arith.constant 0 : index
    %c0_10 = arith.constant 0 : index
    %14 = vector.load %arg6[%c0_9, %c0_10] : memref<512x4xbf16, #tpu.memory_space<vmem>>, vector<512x4xbf16>
    tpu.vector_store %arg6[%c0_9, %c0_10], %13 {strides = array<i32>} : memref<512x4xbf16, #tpu.memory_space<vmem>>, vector<512x4xbf16>,
    return
  }
  func.func @transform_0(%arg0: i32) -> (i32, i32) {
    %c0_i32 = arith.constant 0 : i32
    %c0_i32_0 = arith.constant 0 : i32
    return %arg0, %c0_i32 : i32, i32
  }
  func.func @transform_1(%arg0: i32) -> (i32, i32) {
    %c0_i32 = arith.constant 0 : i32
    %c0_i32_0 = arith.constant 0 : i32
    %c0_i32_1 = arith.constant 0 : i32
    return %c0_i32, %c0_i32_0 : i32, i32
  }
  func.func @transform_2(%arg0: i32) -> (i32, i32) {
    %c0_i32 = arith.constant 0 : i32
    %c0_i32_0 = arith.constant 0 : i32
    %c0_i32_1 = arith.constant 0 : i32
    return %c0_i32, %c0_i32_0 : i32, i32
  }
  func.func @transform_3(%arg0: i32) -> (i32, i32) {
    %c0_i32 = arith.constant 0 : i32
    %c0_i32_0 = arith.constant 0 : i32
    return %arg0, %c0_i32 : i32, i32
  }
  func.func @transform_4(%arg0: i32) -> (i32, i32) {
    %c0_i32 = arith.constant 0 : i32
    %c0_i32_0 = arith.constant 0 : i32
    return %arg0, %c0_i32 : i32, i32
  }
  func.func @transform_5(%arg0: i32) -> (i32, i32) {
    %c0_i32 = arith.constant 0 : i32
    %c0_i32_0 = arith.constant 0 : i32
    return %arg0, %c0_i32 : i32, i32
  }
}

module attributes {stable_mosaic.version = 11 : i64} {
  func.func @_proj_kernel(%arg0: i32, %arg1: memref<512x4xf32, #tpu.memory_space<vmem>>, %arg2: memref<4x8xf32, #tpu.memory_space<vmem>>, %arg3: memref<1x8xf32, #tpu.memory_space<vmem>>, %arg4: memref<512x2xbf16, #tpu.memory_space<vmem>>, %arg5: memref<512x2xbf16, #tpu.memory_space<vmem>>, %arg6: memref<512x4xbf16, #tpu.memory_space<vmem>>) attributes {dimension_semantics = [#tpu.dimension_semantics<parallel>], iteration_bounds = array<i64: 1>, scalar_prefetch = 0 : i64, scratch_operands = 0 : i64, tpu.core_type = #tpu.core_type<tc>, window_params = [{transform_indices = @transform_0, window_bounds = array<i64: 512, 4>}, {pipeline_mode = #tpu.pipeline_mode<synchronous>, transform_indices = @transform_1, window_bounds = array<i64: 4, 8>}, {pipeline_mode = #tpu.pipeline_mode<synchronous>, transform_indices = @transform_2, window_bounds = array<i64: 1, 8>}, {transform_indices = @transform_3, window_bounds = array<i64: 512, 2>}, {transform_indices = @transform_4, window_bounds = array<i64: 512, 2>}, {transform_indices = @transform_5, window_bounds = array<i64: 512, 4>}]} {
    %c0 = arith.constant 0 : index
    %c0_0 = arith.constant 0 : index
    %0 = vector.load %arg1[%c0, %c0_0] : memref<512x4xf32, #tpu.memory_space<vmem>>, vector<512x4xf32>
    %c0_1 = arith.constant 0 : index
    %c0_2 = arith.constant 0 : index
    %1 = vector.load %arg2[%c0_1, %c0_2] : memref<4x8xf32, #tpu.memory_space<vmem>>, vector<4x8xf32>
    %cst = arith.constant dense<0.000000e+00> : vector<512x8xf32>
    %2 = tpu.matmul %0, %1, %cst {dimension_numbers = #tpu.dot_dimension_numbers<[1], [0], [0], [1], [0, 0, 1, 1], [], []>} : vector<512x4xf32>, vector<4x8xf32>, vector<512x8xf32> -> vector<512x8xf32>
    %c0_3 = arith.constant 0 : index
    %c0_4 = arith.constant 0 : index
    %3 = vector.load %arg3[%c0_3, %c0_4] : memref<1x8xf32, #tpu.memory_space<vmem>>, vector<1x8xf32>
    %4 = vector.broadcast %3 : vector<1x8xf32> to vector<512x8xf32>
    %5 = arith.addf %2, %4 : vector<512x8xf32>
    %6 = vector.extract_strided_slice %5 {offsets = [0, 0], sizes = [512, 2], strides = [1, 1]} : vector<512x8xf32> to vector<512x2xf32>
    %7 = arith.truncf %6 : vector<512x2xf32> to vector<512x2xbf16>
    %c0_5 = arith.constant 0 : index
    %c0_6 = arith.constant 0 : index
    %8 = vector.load %arg4[%c0_5, %c0_6] : memref<512x2xbf16, #tpu.memory_space<vmem>>, vector<512x2xbf16>
    tpu.vector_store %arg4[%c0_5, %c0_6], %7 {strides = array<i32>} : memref<512x2xbf16, #tpu.memory_space<vmem>>, vector<512x2xbf16>,
    %9 = vector.extract_strided_slice %5 {offsets = [0, 2], sizes = [512, 2], strides = [1, 1]} : vector<512x8xf32> to vector<512x2xf32>
    %10 = arith.truncf %9 : vector<512x2xf32> to vector<512x2xbf16>
    %c0_7 = arith.constant 0 : index
    %c0_8 = arith.constant 0 : index
    %11 = vector.load %arg5[%c0_7, %c0_8] : memref<512x2xbf16, #tpu.memory_space<vmem>>, vector<512x2xbf16>
    tpu.vector_store %arg5[%c0_7, %c0_8], %10 {strides = array<i32>} : memref<512x2xbf16, #tpu.memory_space<vmem>>, vector<512x2xbf16>,
    %12 = vector.extract_strided_slice %5 {offsets = [0, 4], sizes = [512, 4], strides = [1, 1]} : vector<512x8xf32> to vector<512x4xf32>
    %13 = arith.truncf %12 : vector<512x4xf32> to vector<512x4xbf16>
    %c0_9 = arith.constant 0 : index
    %c0_10 = arith.constant 0 : index
    %14 = vector.load %arg6[%c0_9, %c0_10] : memref<512x4xbf16, #tpu.memory_space<vmem>>, vector<512x4xbf16>
    tpu.vector_store %arg6[%c0_9, %c0_10], %13 {strides = array<i32>} : memref<512x4xbf16, #tpu.memory_space<vmem>>, vector<512x4xbf16>,
    return
  }
  func.func @transform_0(%arg0: i32) -> (i32, i32) {
    %c0_i32 = arith.constant 0 : i32
    %c0_i32_0 = arith.constant 0 : i32
    return %arg0, %c0_i32 : i32, i32
  }
  func.func @transform_1(%arg0: i32) -> (i32, i32) {
    %c0_i32 = arith.constant 0 : i32
    %c0_i32_0 = arith.constant 0 : i32
    %c0_i32_1 = arith.constant 0 : i32
    return %c0_i32, %c0_i32_0 : i32, i32
  }
  func.func @transform_2(%arg0: i32) -> (i32, i32) {
    %c0_i32 = arith.constant 0 : i32
    %c0_i32_0 = arith.constant 0 : i32
    %c0_i32_1 = arith.constant 0 : i32
    return %c0_i32, %c0_i32_0 : i32, i32
  }
  func.func @transform_3(%arg0: i32) -> (i32, i32) {
    %c0_i32 = arith.constant 0 : i32
    %c0_i32_0 = arith.constant 0 : i32
    return %arg0, %c0_i32 : i32, i32
  }
  func.func @transform_4(%arg0: i32) -> (i32, i32) {
    %c0_i32 = arith.constant 0 : i32
    %c0_i32_0 = arith.constant 0 : i32
    return %arg0, %c0_i32 : i32, i32
  }
  func.func @transform_5(%arg0: i32) -> (i32, i32) {
    %c0_i32 = arith.constant 0 : i32
    %c0_i32_0 = arith.constant 0 : i32
    return %arg0, %c0_i32 : i32, i32
  }
}

</mosaic_0001>

<llo_original>
// kernel: tpu_custom_call.1
$region0: #{tpu_custom_call.1}
  #allocation0 [shape = 'u32[]', space=smem, size = 0x4, offset = 0x4, fixed_abs, tag = 'smem constant byte address 0x4 - core index']
  #allocation1 [shape = 'u32[72,128]{1,0:T(1,128)}', space=vmem, size = 0x9000, scoped, tag = 'internal scratch']
  %s0 = inlined_call_operand.vmem [shape: f32[512,4], index: 0, kind: input, shape index: {}]
  %s1 = inlined_call_operand.vmem [shape: f32[4,8], index: 1, kind: input, shape index: {}]
  %s2 = inlined_call_operand.vmem [shape: f32[1,8], index: 2, kind: input, shape index: {}]
  %s3 = inlined_call_operand.vmem [shape: bf16[512,2], index: 3, kind: output, shape index: {0}]
  %s4 = inlined_call_operand.vmem [shape: bf16[512,2], index: 4, kind: output, shape index: {1}]
  %s5 = inlined_call_operand.vmem [shape: bf16[512,4], index: 5, kind: output, shape index: {2}]
  %6 = xla_tuple %s3, %s4, %s5
  %s7 = sld [smem:[#allocation0]]
  $region38: #{tpu_custom_call.1} parent=0
    _
  %s9 = ssub.s32 1, %s7
  %s10 = scalar_select 0, %s9, %s7
  // Predicated region
  $region2: #{tpu_custom_call.1} parent=0 // pred_check
    _
  $region3: #{tpu_custom_call.1} parent=0 // pred_check_branch
    %12 = sbr.rel (0) target = $region5
  $region4: #{tpu_custom_call.1} parent=0 // pred_region
    _
  $region5: #{tpu_custom_call.1} parent=0 // pred_fallthru
    _
  // Predicated region
  $region6: #{tpu_custom_call.1} parent=0 // pred_check
    _
  $region7: #{tpu_custom_call.1} parent=0 // pred_check_branch
    %14 = sbr.rel (0) target = $region9
  $region8: #{tpu_custom_call.1} parent=0 // pred_region
    _
  $region9: #{tpu_custom_call.1} parent=0 // pred_fallthru
    _
  // Predicated region
  $region10: #{tpu_custom_call.1} parent=0 // pred_check
    _
  $region11: #{tpu_custom_call.1} parent=0 // pred_check_branch
    %16 = sbr.rel (0) target = $region13
  $region12: #{tpu_custom_call.1} parent=0 // pred_region
    _
  $region13: #{tpu_custom_call.1} parent=0 // pred_fallthru
    _
  %v17 = vld [vmem:[%s0] sm:$0xff]
  %v18 = vld [vmem:[%s0 + $0x8] sm:$0xff]
  %v19 = vld [vmem:[%s0 + $0x10] sm:$0xff]
  %v20 = vld [vmem:[%s0 + $0x18] sm:$0xff]
  %v21 = vld [vmem:[%s0 + $0x20] sm:$0xff]
  %v22 = vld [vmem:[%s0 + $0x28] sm:$0xff]
  %v23 = vld [vmem:[%s0 + $0x30] sm:$0xff]
  %v24 = vld [vmem:[%s0 + $0x38] sm:$0xff]
  %v25 = vld [vmem:[%s0 + $0x40] sm:$0xff]
  %v26 = vld [vmem:[%s0 + $0x48] sm:$0xff]
  %v27 = vld [vmem:[%s0 + $0x50] sm:$0xff]
  %v28 = vld [vmem:[%s0 + $0x58] sm:$0xff]
  %v29 = vld [vmem:[%s0 + $0x60] sm:$0xff]
  %v30 = vld [vmem:[%s0 + $0x68] sm:$0xff]
  %v31 = vld [vmem:[%s0 + $0x70] sm:$0xff]
  %v32 = vld [vmem:[%s0 + $0x78] sm:$0xff]
  %v33 = vld [vmem:[%s0 + $0x80] sm:$0xff]
  %v34 = vld [vmem:[%s0 + $0x88] sm:$0xff]
  %v35 = vld [vmem:[%s0 + $0x90] sm:$0xff]
  %v36 = vld [vmem:[%s0 + $0x98] sm:$0xff]
  %v37 = vld [vmem:[%s0 + $0xa0] sm:$0xff]
  %v38 = vld [vmem:[%s0 + $0xa8] sm:$0xff]
  %v39 = vld [vmem:[%s0 + $0xb0] sm:$0xff]
  %v40 = vld [vmem:[%s0 + $0xb8] sm:$0xff]
  %v41 = vld [vmem:[%s0 + $0xc0] sm:$0xff]
  %v42 = vld [vmem:[%s0 + $0xc8] sm:$0xff]
  %v43 = vld [vmem:[%s0 + $0xd0] sm:$0xff]
  %v44 = vld [vmem:[%s0 + $0xd8] sm:$0xff]
  %v45 = vld [vmem:[%s0 + $0xe0] sm:$0xff]
  %v46 = vld [vmem:[%s0 + $0xe8] sm:$0xff]
  %v47 = vld [vmem:[%s0 + $0xf0] sm:$0xff]
  %v48 = vld [vmem:[%s0 + $0xf8] sm:$0xff]
  %v49 = vld [vmem:[%s0 + $0x100] sm:$0xff]
  %v50 = vld [vmem:[%s0 + $0x108] sm:$0xff]
  %v51 = vld [vmem:[%s0 + $0x110] sm:$0xff]
  %v52 = vld [vmem:[%s0 + $0x118] sm:$0xff]
  %v53 = vld [vmem:[%s0 + $0x120] sm:$0xff]
  %v54 = vld [vmem:[%s0 + $0x128] sm:$0xff]
  %v55 = vld [vmem:[%s0 + $0x130] sm:$0xff]
  %v56 = vld [vmem:[%s0 + $0x138] sm:$0xff]
  %v57 = vld [vmem:[%s0 + $0x140] sm:$0xff]
  %v58 = vld [vmem:[%s0 + $0x148] sm:$0xff]
  %v59 = vld [vmem:[%s0 + $0x150] sm:$0xff]
  %v60 = vld [vmem:[%s0 + $0x158] sm:$0xff]
  %v61 = vld [vmem:[%s0 + $0x160] sm:$0xff]
  %v62 = vld [vmem:[%s0 + $0x168] sm:$0xff]
  %v63 = vld [vmem:[%s0 + $0x170] sm:$0xff]
  %v64 = vld [vmem:[%s0 + $0x178] sm:$0xff]
  %v65 = vld [vmem:[%s0 + $0x180] sm:$0xff]
  %v66 = vld [vmem:[%s0 + $0x188] sm:$0xff]
  %v67 = vld [vmem:[%s0 + $0x190] sm:$0xff]
  %v68 = vld [vmem:[%s0 + $0x198] sm:$0xff]
  %v69 = vld [vmem:[%s0 + $0x1a0] sm:$0xff]
  %v70 = vld [vmem:[%s0 + $0x1a8] sm:$0xff]
  %v71 = vld [vmem:[%s0 + $0x1b0] sm:$0xff]
  %v72 = vld [vmem:[%s0 + $0x1b8] sm:$0xff]
  %v73 = vld [vmem:[%s0 + $0x1c0] sm:$0xff]
  %v74 = vld [vmem:[%s0 + $0x1c8] sm:$0xff]
  %v75 = vld [vmem:[%s0 + $0x1d0] sm:$0xff]
  %v76 = vld [vmem:[%s0 + $0x1d8] sm:$0xff]
  %v77 = vld [vmem:[%s0 + $0x1e0] sm:$0xff]
  %v78 = vld [vmem:[%s0 + $0x1e8] sm:$0xff]
  %v79 = vld [vmem:[%s0 + $0x1f0] sm:$0xff]
  %v80 = vld [vmem:[%s0 + $0x1f8] sm:$0xff]
  %v81 = vld [vmem:[%s1] sm:$0xf]
  %v82 = vld [vmem:[%s2] sm:$0x1]
  %v84 = vperm.slane %v82, 0
  %vm86 = vcmask 31744
  %v88 = vsel %vm86, %v17, 0
  %v91 = vsel %vm86, %v18, 0
  %v94 = vsel %vm86, %v19, 0
  %v97 = vsel %vm86, %v20, 0
  %v100 = vsel %vm86, %v21, 0
  %v103 = vsel %vm86, %v22, 0
  %v106 = vsel %vm86, %v23, 0
  %v109 = vsel %vm86, %v24, 0
  %v112 = vsel %vm86, %v25, 0
  %v115 = vsel %vm86, %v26, 0
  %v118 = vsel %vm86, %v27, 0
  %v121 = vsel %vm86, %v28, 0
  %v124 = vsel %vm86, %v29, 0
  %v127 = vsel %vm86, %v30, 0
  %v130 = vsel %vm86, %v31, 0
  %v133 = vsel %vm86, %v32, 0
  %v136 = vsel %vm86, %v33, 0
  %v139 = vsel %vm86, %v34, 0
  %v142 = vsel %vm86, %v35, 0
  %v145 = vsel %vm86, %v36, 0
  %v148 = vsel %vm86, %v37, 0
  %v151 = vsel %vm86, %v38, 0
  %v154 = vsel %vm86, %v39, 0
  %v157 = vsel %vm86, %v40, 0
  %v160 = vsel %vm86, %v41, 0
  %v163 = vsel %vm86, %v42, 0
  %v166 = vsel %vm86, %v43, 0
  %v169 = vsel %vm86, %v44, 0
  %v172 = vsel %vm86, %v45, 0
  %v175 = vsel %vm86, %v46, 0
  %v178 = vsel %vm86, %v47, 0
  %v181 = vsel %vm86, %v48, 0
  %v184 = vsel %vm86, %v49, 0
  %v187 = vsel %vm86, %v50, 0
  %v190 = vsel %vm86, %v51, 0
  %v193 = vsel %vm86, %v52, 0
  %v196 = vsel %vm86, %v53, 0
  %v199 = vsel %vm86, %v54, 0
  %v202 = vsel %vm86, %v55, 0
  %v205 = vsel %vm86, %v56, 0
  %v208 = vsel %vm86, %v57, 0
  %v211 = vsel %vm86, %v58, 0
  %v214 = vsel %vm86, %v59, 0
  %v217 = vsel %vm86, %v60, 0
  %v220 = vsel %vm86, %v61, 0
  %v223 = vsel %vm86, %v62, 0
  %v226 = vsel %vm86, %v63, 0
  %v229 = vsel %vm86, %v64, 0
  %v232 = vsel %vm86, %v65, 0
  %v235 = vsel %vm86, %v66, 0
  %v238 = vsel %vm86, %v67, 0
  %v241 = vsel %vm86, %v68, 0
  %v244 = vsel %vm86, %v69, 0
  %v247 = vsel %vm86, %v70, 0
  %v250 = vsel %vm86, %v71, 0
  %v253 = vsel %vm86, %v72, 0
  %v256 = vsel %vm86, %v73, 0
  %v259 = vsel %vm86, %v74, 0
  %v262 = vsel %vm86, %v75, 0
  %v265 = vsel %vm86, %v76, 0
  %v268 = vsel %vm86, %v77, 0
  %v271 = vsel %vm86, %v78, 0
  %v274 = vsel %vm86, %v79, 0
  %v277 = vsel %vm86, %v80, 0
  %vm279 = vcmask 1043456
  %v281 = vsel %vm279, %v81, 0
  %283 = vmatpush.msra.mxu0 0.0
  %284 = vmatpush.msra.mxu0 0.0
  %285 = vmatpush.msra.mxu0 0.0
  %286 = vmatpush.msra.mxu0 0.0
  %287 = vmatpush.msra.mxu0 0.0
  %288 = vmatpush.msra.mxu0 0.0
  %289 = vmatpush.msra.mxu0 0.0
  %290 = vmatpush.msra.mxu0 0.0
  %291 = vmatpush.msra.mxu0 0.0
  %292 = vmatpush.msra.mxu0 0.0
  %293 = vmatpush.msra.mxu0 0.0
  %294 = vmatpush.msra.mxu0 0.0
  %295 = vmatpush.msra.mxu0 0.0
  %296 = vmatpush.msra.mxu0 0.0
  %297 = vmatpush.msra.mxu0 0.0
  %298 = vmatpush.msra.mxu0 %v281
  %299 = vmatmul.f32.gmra.mxu0 %v88
  %v300 = vpop.f32.mrf.mxu0
  %v301 = vadd.f32 %v84, %v300
  %302 = vmatmul.f32.gmra.mxu0 %v91
  %v303 = vpop.f32.mrf.mxu0
  %v304 = vadd.f32 %v84, %v303
  %305 = vmatmul.f32.gmra.mxu0 %v94
  %v306 = vpop.f32.mrf.mxu0
  %v307 = vadd.f32 %v84, %v306
  %308 = vmatmul.f32.gmra.mxu0 %v97
  %v309 = vpop.f32.mrf.mxu0
  %v310 = vadd.f32 %v84, %v309
  %311 = vmatmul.f32.gmra.mxu0 %v100
  %v312 = vpop.f32.mrf.mxu0
  %v313 = vadd.f32 %v84, %v312
  %314 = vmatmul.f32.gmra.mxu0 %v103
  %v315 = vpop.f32.mrf.mxu0
  %v316 = vadd.f32 %v84, %v315
  %317 = vmatmul.f32.gmra.mxu0 %v106
  %v318 = vpop.f32.mrf.mxu0
  %v319 = vadd.f32 %v84, %v318
  %320 = vmatmul.f32.gmra.mxu0 %v109
  %v321 = vpop.f32.mrf.mxu0
  %v322 = vadd.f32 %v84, %v321
  %323 = vmatmul.f32.gmra.mxu0 %v112
  %v324 = vpop.f32.mrf.mxu0
  %v325 = vadd.f32 %v84, %v324
  %326 = vmatmul.f32.gmra.mxu0 %v115
  %v327 = vpop.f32.mrf.mxu0
  %v328 = vadd.f32 %v84, %v327
  %329 = vmatmul.f32.gmra.mxu0 %v118
  %v330 = vpop.f32.mrf.mxu0
  %v331 = vadd.f32 %v84, %v330
  %332 = vmatmul.f32.gmra.mxu0 %v121
  %v333 = vpop.f32.mrf.mxu0
  %v334 = vadd.f32 %v84, %v333
  %335 = vmatmul.f32.gmra.mxu0 %v124
  %v336 = vpop.f32.mrf.mxu0
  %v337 = vadd.f32 %v84, %v336
  %338 = vmatmul.f32.gmra.mxu0 %v127
  %v339 = vpop.f32.mrf.mxu0
  %v340 = vadd.f32 %v84, %v339
  %341 = vmatmul.f32.gmra.mxu0 %v130
  %v342 = vpop.f32.mrf.mxu0
  %v343 = vadd.f32 %v84, %v342
  %344 = vmatmul.f32.gmra.mxu0 %v133
  %v345 = vpop.f32.mrf.mxu0
  %v346 = vadd.f32 %v84, %v345
  %347 = vmatmul.f32.gmra.mxu0 %v136
  %v348 = vpop.f32.mrf.mxu0
  %v349 = vadd.f32 %v84, %v348
  %350 = vmatmul.f32.gmra.mxu0 %v139
  %v351 = vpop.f32.mrf.mxu0
  %v352 = vadd.f32 %v84, %v351
  %353 = vmatmul.f32.gmra.mxu0 %v142
  %v354 = vpop.f32.mrf.mxu0
  %v355 = vadd.f32 %v84, %v354
  %356 = vmatmul.f32.gmra.mxu0 %v145
  %v357 = vpop.f32.mrf.mxu0
  %v358 = vadd.f32 %v84, %v357
  %359 = vmatmul.f32.gmra.mxu0 %v148
  %v360 = vpop.f32.mrf.mxu0
  %v361 = vadd.f32 %v84, %v360
  %362 = vmatmul.f32.gmra.mxu0 %v151
  %v363 = vpop.f32.mrf.mxu0
  %v364 = vadd.f32 %v84, %v363
  %365 = vmatmul.f32.gmra.mxu0 %v154
  %v366 = vpop.f32.mrf.mxu0
  %v367 = vadd.f32 %v84, %v366
  %368 = vmatmul.f32.gmra.mxu0 %v157
  %v369 = vpop.f32.mrf.mxu0
  %v370 = vadd.f32 %v84, %v369
  %371 = vmatmul.f32.gmra.mxu0 %v160
  %v372 = vpop.f32.mrf.mxu0
  %v373 = vadd.f32 %v84, %v372
  %374 = vmatmul.f32.gmra.mxu0 %v163
  %v375 = vpop.f32.mrf.mxu0
  %v376 = vadd.f32 %v84, %v375
  %377 = vmatmul.f32.gmra.mxu0 %v166
  %v378 = vpop.f32.mrf.mxu0
  %v379 = vadd.f32 %v84, %v378
  %380 = vmatmul.f32.gmra.mxu0 %v169
  %v381 = vpop.f32.mrf.mxu0
  %v382 = vadd.f32 %v84, %v381
  %383 = vmatmul.f32.gmra.mxu0 %v172
  %v384 = vpop.f32.mrf.mxu0
  %v385 = vadd.f32 %v84, %v384
  %386 = vmatmul.f32.gmra.mxu0 %v175
  %v387 = vpop.f32.mrf.mxu0
  %v388 = vadd.f32 %v84, %v387
  %389 = vmatmul.f32.gmra.mxu0 %v178
  %v390 = vpop.f32.mrf.mxu0
  %v391 = vadd.f32 %v84, %v390
  %392 = vmatmul.f32.gmra.mxu0 %v181
  %v393 = vpop.f32.mrf.mxu0
  %v394 = vadd.f32 %v84, %v393
  %395 = vmatmul.f32.gmra.mxu0 %v184
  %v396 = vpop.f32.mrf.mxu0
  %v397 = vadd.f32 %v84, %v396
  %398 = vmatmul.f32.gmra.mxu0 %v187
  %v399 = vpop.f32.mrf.mxu0
  %v400 = vadd.f32 %v84, %v399
  %401 = vmatmul.f32.gmra.mxu0 %v190
  %v402 = vpop.f32.mrf.mxu0
  %v403 = vadd.f32 %v84, %v402
  %404 = vmatmul.f32.gmra.mxu0 %v193
  %v405 = vpop.f32.mrf.mxu0
  %v406 = vadd.f32 %v84, %v405
  %407 = vmatmul.f32.gmra.mxu0 %v196
  %v408 = vpop.f32.mrf.mxu0
  %v409 = vadd.f32 %v84, %v408
  %410 = vmatmul.f32.gmra.mxu0 %v199
  %v411 = vpop.f32.mrf.mxu0
  %v412 = vadd.f32 %v84, %v411
  %413 = vmatmul.f32.gmra.mxu0 %v202
  %v414 = vpop.f32.mrf.mxu0
  %v415 = vadd.f32 %v84, %v414
  %416 = vmatmul.f32.gmra.mxu0 %v205
  %v417 = vpop.f32.mrf.mxu0
  %v418 = vadd.f32 %v84, %v417
  %419 = vmatmul.f32.gmra.mxu0 %v208
  %v420 = vpop.f32.mrf.mxu0
  %v421 = vadd.f32 %v84, %v420
  %422 = vmatmul.f32.gmra.mxu0 %v211
  %v423 = vpop.f32.mrf.mxu0
  %v424 = vadd.f32 %v84, %v423
  %425 = vmatmul.f32.gmra.mxu0 %v214
  %v426 = vpop.f32.mrf.mxu0
  %v427 = vadd.f32 %v84, %v426
  %428 = vmatmul.f32.gmra.mxu0 %v217
  %v429 = vpop.f32.mrf.mxu0
  %v430 = vadd.f32 %v84, %v429
  %431 = vmatmul.f32.gmra.mxu0 %v220
  %v432 = vpop.f32.mrf.mxu0
  %v433 = vadd.f32 %v84, %v432
  %434 = vmatmul.f32.gmra.mxu0 %v223
  %v435 = vpop.f32.mrf.mxu0
  %v436 = vadd.f32 %v84, %v435
  %437 = vmatmul.f32.gmra.mxu0 %v226
  %v438 = vpop.f32.mrf.mxu0
  %v439 = vadd.f32 %v84, %v438
  %440 = vmatmul.f32.gmra.mxu0 %v229
  %v441 = vpop.f32.mrf.mxu0
  %v442 = vadd.f32 %v84, %v441
  %443 = vmatmul.f32.gmra.mxu0 %v232
  %v444 = vpop.f32.mrf.mxu0
  %v445 = vadd.f32 %v84, %v444
  %446 = vmatmul.f32.gmra.mxu0 %v235
  %v447 = vpop.f32.mrf.mxu0
  %v448 = vadd.f32 %v84, %v447
  %449 = vmatmul.f32.gmra.mxu0 %v238
  %v450 = vpop.f32.mrf.mxu0
  %v451 = vadd.f32 %v84, %v450
  %452 = vmatmul.f32.gmra.mxu0 %v241
  %v453 = vpop.f32.mrf.mxu0
  %v454 = vadd.f32 %v84, %v453
  %455 = vmatmul.f32.gmra.mxu0 %v244
  %v456 = vpop.f32.mrf.mxu0
  %v457 = vadd.f32 %v84, %v456
  %458 = vmatmul.f32.gmra.mxu0 %v247
  %v459 = vpop.f32.mrf.mxu0
  %v460 = vadd.f32 %v84, %v459
  %461 = vmatmul.f32.gmra.mxu0 %v250
  %v462 = vpop.f32.mrf.mxu0
  %v463 = vadd.f32 %v84, %v462
  %464 = vmatmul.f32.gmra.mxu0 %v253
  %v465 = vpop.f32.mrf.mxu0
  %v466 = vadd.f32 %v84, %v465
  %467 = vmatmul.f32.gmra.mxu0 %v256
  %v468 = vpop.f32.mrf.mxu0
  %v469 = vadd.f32 %v84, %v468
  %470 = vmatmul.f32.gmra.mxu0 %v259
  %v471 = vpop.f32.mrf.mxu0
  %v472 = vadd.f32 %v84, %v471
  %473 = vmatmul.f32.gmra.mxu0 %v262
  %v474 = vpop.f32.mrf.mxu0
  %v475 = vadd.f32 %v84, %v474
  %476 = vmatmul.f32.gmra.mxu0 %v265
  %v477 = vpop.f32.mrf.mxu0
  %v478 = vadd.f32 %v84, %v477
  %479 = vmatmul.f32.gmra.mxu0 %v268
  %v480 = vpop.f32.mrf.mxu0
  %v481 = vadd.f32 %v84, %v480
  %482 = vmatmul.f32.gmra.mxu0 %v271
  %v483 = vpop.f32.mrf.mxu0
  %v484 = vadd.f32 %v84, %v483
  %485 = vmatmul.f32.gmra.mxu0 %v274
  %v486 = vpop.f32.mrf.mxu0
  %v487 = vadd.f32 %v84, %v486
  %488 = vmatmul.f32.gmra.mxu0 %v277
  %v489 = vpop.f32.mrf.mxu0
  %v490 = vadd.f32 %v84, %v489
  %491 = vdwg.mxu0
  %v492 = vpack.c.bf16 %v301, %v301
  %v493 = vpack.c.bf16 %v304, %v304
  %v494 = vpack.c.bf16 %v307, %v307
  %v495 = vpack.c.bf16 %v310, %v310
  %v496 = vpack.c.bf16 %v313, %v313
  %v497 = vpack.c.bf16 %v316, %v316
  %v498 = vpack.c.bf16 %v319, %v319
  %v499 = vpack.c.bf16 %v322, %v322
  %v500 = vpack.c.bf16 %v325, %v325
  %v501 = vpack.c.bf16 %v328, %v328
  %v502 = vpack.c.bf16 %v331, %v331
  %v503 = vpack.c.bf16 %v334, %v334
  %v504 = vpack.c.bf16 %v337, %v337
  %v505 = vpack.c.bf16 %v340, %v340
  %v506 = vpack.c.bf16 %v343, %v343
  %v507 = vpack.c.bf16 %v346, %v346
  %v508 = vpack.c.bf16 %v349, %v349
  %v509 = vpack.c.bf16 %v352, %v352
  %v510 = vpack.c.bf16 %v355, %v355
  %v511 = vpack.c.bf16 %v358, %v358
  %v512 = vpack.c.bf16 %v361, %v361
  %v513 = vpack.c.bf16 %v364, %v364
  %v514 = vpack.c.bf16 %v367, %v367
  %v515 = vpack.c.bf16 %v370, %v370
  %v516 = vpack.c.bf16 %v373, %v373
  %v517 = vpack.c.bf16 %v376, %v376
  %v518 = vpack.c.bf16 %v379, %v379
  %v519 = vpack.c.bf16 %v382, %v382
  %v520 = vpack.c.bf16 %v385, %v385
  %v521 = vpack.c.bf16 %v388, %v388
  %v522 = vpack.c.bf16 %v391, %v391
  %v523 = vpack.c.bf16 %v394, %v394
  %v524 = vpack.c.bf16 %v397, %v397
  %v525 = vpack.c.bf16 %v400, %v400
  %v526 = vpack.c.bf16 %v403, %v403
  %v527 = vpack.c.bf16 %v406, %v406
  %v528 = vpack.c.bf16 %v409, %v409
  %v529 = vpack.c.bf16 %v412, %v412
  %v530 = vpack.c.bf16 %v415, %v415
  %v531 = vpack.c.bf16 %v418, %v418
  %v532 = vpack.c.bf16 %v421, %v421
  %v533 = vpack.c.bf16 %v424, %v424
  %v534 = vpack.c.bf16 %v427, %v427
  %v535 = vpack.c.bf16 %v430, %v430
  %v536 = vpack.c.bf16 %v433, %v433
  %v537 = vpack.c.bf16 %v436, %v436
  %v538 = vpack.c.bf16 %v439, %v439
  %v539 = vpack.c.bf16 %v442, %v442
  %v540 = vpack.c.bf16 %v445, %v445
  %v541 = vpack.c.bf16 %v448, %v448
  %v542 = vpack.c.bf16 %v451, %v451
  %v543 = vpack.c.bf16 %v454, %v454
  %v544 = vpack.c.bf16 %v457, %v457
  %v545 = vpack.c.bf16 %v460, %v460
  %v546 = vpack.c.bf16 %v463, %v463
  %v547 = vpack.c.bf16 %v466, %v466
  %v548 = vpack.c.bf16 %v469, %v469
  %v549 = vpack.c.bf16 %v472, %v472
  %v550 = vpack.c.bf16 %v475, %v475
  %v551 = vpack.c.bf16 %v478, %v478
  %v552 = vpack.c.bf16 %v481, %v481
  %v553 = vpack.c.bf16 %v484, %v484
  %v554 = vpack.c.bf16 %v487, %v487
  %v555 = vpack.c.bf16 %v490, %v490
  %vm556 = vcmask 11264
  %557 = vst.msk [vmem:[%s3] sm:$0xf] %vm556, %v492
  %558 = vst.msk [vmem:[%s3 + $0x4] sm:$0xf] %vm556, %v493
  %559 = vst.msk [vmem:[%s3 + $0x8] sm:$0xf] %vm556, %v494
  %560 = vst.msk [vmem:[%s3 + $0xc] sm:$0xf] %vm556, %v495
  %561 = vst.msk [vmem:[%s3 + $0x10] sm:$0xf] %vm556, %v496
  %562 = vst.msk [vmem:[%s3 + $0x14] sm:$0xf] %vm556, %v497
  %563 = vst.msk [vmem:[%s3 + $0x18] sm:$0xf] %vm556, %v498
  %564 = vst.msk [vmem:[%s3 + $0x1c] sm:$0xf] %vm556, %v499
  %565 = vst.msk [vmem:[%s3 + $0x20] sm:$0xf] %vm556, %v500
  %566 = vst.msk [vmem:[%s3 + $0x24] sm:$0xf] %vm556, %v501
  %567 = vst.msk [vmem:[%s3 + $0x28] sm:$0xf] %vm556, %v502
  %568 = vst.msk [vmem:[%s3 + $0x2c] sm:$0xf] %vm556, %v503
  %569 = vst.msk [vmem:[%s3 + $0x30] sm:$0xf] %vm556, %v504
  %570 = vst.msk [vmem:[%s3 + $0x34] sm:$0xf] %vm556, %v505
  %571 = vst.msk [vmem:[%s3 + $0x38] sm:$0xf] %vm556, %v506
  %572 = vst.msk [vmem:[%s3 + $0x3c] sm:$0xf] %vm556, %v507
  %573 = vst.msk [vmem:[%s3 + $0x40] sm:$0xf] %vm556, %v508
  %574 = vst.msk [vmem:[%s3 + $0x44] sm:$0xf] %vm556, %v509
  %575 = vst.msk [vmem:[%s3 + $0x48] sm:$0xf] %vm556, %v510
  %576 = vst.msk [vmem:[%s3 + $0x4c] sm:$0xf] %vm556, %v511
  %577 = vst.msk [vmem:[%s3 + $0x50] sm:$0xf] %vm556, %v512
  %578 = vst.msk [vmem:[%s3 + $0x54] sm:$0xf] %vm556, %v513
  %579 = vst.msk [vmem:[%s3 + $0x58] sm:$0xf] %vm556, %v514
  %580 = vst.msk [vmem:[%s3 + $0x5c] sm:$0xf] %vm556, %v515
  %581 = vst.msk [vmem:[%s3 + $0x60] sm:$0xf] %vm556, %v516
  %582 = vst.msk [vmem:[%s3 + $0x64] sm:$0xf] %vm556, %v517
  %583 = vst.msk [vmem:[%s3 + $0x68] sm:$0xf] %vm556, %v518
  %584 = vst.msk [vmem:[%s3 + $0x6c] sm:$0xf] %vm556, %v519
  %585 = vst.msk [vmem:[%s3 + $0x70] sm:$0xf] %vm556, %v520
  %586 = vst.msk [vmem:[%s3 + $0x74] sm:$0xf] %vm556, %v521
  %587 = vst.msk [vmem:[%s3 + $0x78] sm:$0xf] %vm556, %v522
  %588 = vst.msk [vmem:[%s3 + $0x7c] sm:$0xf] %vm556, %v523
  %589 = vst.msk [vmem:[%s3 + $0x80] sm:$0xf] %vm556, %v524
  %590 = vst.msk [vmem:[%s3 + $0x84] sm:$0xf] %vm556, %v525
  %591 = vst.msk [vmem:[%s3 + $0x88] sm:$0xf] %vm556, %v526
  %592 = vst.msk [vmem:[%s3 + $0x8c] sm:$0xf] %vm556, %v527
  %593 = vst.msk [vmem:[%s3 + $0x90] sm:$0xf] %vm556, %v528
  %594 = vst.msk [vmem:[%s3 + $0x94] sm:$0xf] %vm556, %v529
  %595 = vst.msk [vmem:[%s3 + $0x98] sm:$0xf] %vm556, %v530
  %596 = vst.msk [vmem:[%s3 + $0x9c] sm:$0xf] %vm556, %v531
  %597 = vst.msk [vmem:[%s3 + $0xa0] sm:$0xf] %vm556, %v532
  %598 = vst.msk [vmem:[%s3 + $0xa4] sm:$0xf] %vm556, %v533
  %599 = vst.msk [vmem:[%s3 + $0xa8] sm:$0xf] %vm556, %v534
  %600 = vst.msk [vmem:[%s3 + $0xac] sm:$0xf] %vm556, %v535
  %601 = vst.msk [vmem:[%s3 + $0xb0] sm:$0xf] %vm556, %v536
  %602 = vst.msk [vmem:[%s3 + $0xb4] sm:$0xf] %vm556, %v537
  %603 = vst.msk [vmem:[%s3 + $0xb8] sm:$0xf] %vm556, %v538
  %604 = vst.msk [vmem:[%s3 + $0xbc] sm:$0xf] %vm556, %v539
  %605 = vst.msk [vmem:[%s3 + $0xc0] sm:$0xf] %vm556, %v540
  %606 = vst.msk [vmem:[%s3 + $0xc4] sm:$0xf] %vm556, %v541
  %607 = vst.msk [vmem:[%s3 + $0xc8] sm:$0xf] %vm556, %v542
  %608 = vst.msk [vmem:[%s3 + $0xcc] sm:$0xf] %vm556, %v543
  %609 = vst.msk [vmem:[%s3 + $0xd0] sm:$0xf] %vm556, %v544
  %610 = vst.msk [vmem:[%s3 + $0xd4] sm:$0xf] %vm556, %v545
  %611 = vst.msk [vmem:[%s3 + $0xd8] sm:$0xf] %vm556, %v546
  %612 = vst.msk [vmem:[%s3 + $0xdc] sm:$0xf] %vm556, %v547
  %613 = vst.msk [vmem:[%s3 + $0xe0] sm:$0xf] %vm556, %v548
  %614 = vst.msk [vmem:[%s3 + $0xe4] sm:$0xf] %vm556, %v549
  %615 = vst.msk [vmem:[%s3 + $0xe8] sm:$0xf] %vm556, %v550
  %616 = vst.msk [vmem:[%s3 + $0xec] sm:$0xf] %vm556, %v551
  %617 = vst.msk [vmem:[%s3 + $0xf0] sm:$0xf] %vm556, %v552
  %618 = vst.msk [vmem:[%s3 + $0xf4] sm:$0xf] %vm556, %v553
  %619 = vst.msk [vmem:[%s3 + $0xf8] sm:$0xf] %vm556, %v554
  %620 = vst.msk [vmem:[%s3 + $0xfc] sm:$0xf] %vm556, %v555
  %685 = vrot.lane.b32.xlu0 %v492, 126
  %v686 = vpop.permute.xlu0 %685
  %687 = vrot.lane.b32.xlu0 %v493, 126
  %v688 = vpop.permute.xlu0 %687
  %689 = vrot.lane.b32.xlu0 %v494, 126
  %v690 = vpop.permute.xlu0 %689
  %691 = vrot.lane.b32.xlu0 %v495, 126
  %v692 = vpop.permute.xlu0 %691
  %693 = vrot.lane.b32.xlu0 %v496, 126
  %v694 = vpop.permute.xlu0 %693
  %695 = vrot.lane.b32.xlu0 %v497, 126
  %v696 = vpop.permute.xlu0 %695
  %697 = vrot.lane.b32.xlu0 %v498, 126
  %v698 = vpop.permute.xlu0 %697
  %699 = vrot.lane.b32.xlu0 %v499, 126
  %v700 = vpop.permute.xlu0 %699
  %701 = vrot.lane.b32.xlu0 %v500, 126
  %v702 = vpop.permute.xlu0 %701
  %703 = vrot.lane.b32.xlu0 %v501, 126
  %v704 = vpop.permute.xlu0 %703
  %705 = vrot.lane.b32.xlu0 %v502, 126
  %v706 = vpop.permute.xlu0 %705
  %707 = vrot.lane.b32.xlu0 %v503, 126
  %v708 = vpop.permute.xlu0 %707
  %709 = vrot.lane.b32.xlu0 %v504, 126
  %v710 = vpop.permute.xlu0 %709
  %711 = vrot.lane.b32.xlu0 %v505, 126
  %v712 = vpop.permute.xlu0 %711
  %713 = vrot.lane.b32.xlu0 %v506, 126
  %v714 = vpop.permute.xlu0 %713
  %715 = vrot.lane.b32.xlu0 %v507, 126
  %v716 = vpop.permute.xlu0 %715
  %717 = vrot.lane.b32.xlu0 %v508, 126
  %v718 = vpop.permute.xlu0 %717
  %719 = vrot.lane.b32.xlu0 %v509, 126
  %v720 = vpop.permute.xlu0 %719
  %721 = vrot.lane.b32.xlu0 %v510, 126
  %v722 = vpop.permute.xlu0 %721
  %723 = vrot.lane.b32.xlu0 %v511, 126
  %v724 = vpop.permute.xlu0 %723
  %725 = vrot.lane.b32.xlu0 %v512, 126
  %v726 = vpop.permute.xlu0 %725
  %727 = vrot.lane.b32.xlu0 %v513, 126
  %v728 = vpop.permute.xlu0 %727
  %729 = vrot.lane.b32.xlu0 %v514, 126
  %v730 = vpop.permute.xlu0 %729
  %731 = vrot.lane.b32.xlu0 %v515, 126
  %v732 = vpop.permute.xlu0 %731
  %733 = vrot.lane.b32.xlu0 %v516, 126
  %v734 = vpop.permute.xlu0 %733
  %735 = vrot.lane.b32.xlu0 %v517, 126
  %v736 = vpop.permute.xlu0 %735
  %737 = vrot.lane.b32.xlu0 %v518, 126
  %v738 = vpop.permute.xlu0 %737
  %739 = vrot.lane.b32.xlu0 %v519, 126
  %v740 = vpop.permute.xlu0 %739
  %741 = vrot.lane.b32.xlu0 %v520, 126
  %v742 = vpop.permute.xlu0 %741
  %743 = vrot.lane.b32.xlu0 %v521, 126
  %v744 = vpop.permute.xlu0 %743
  %745 = vrot.lane.b32.xlu0 %v522, 126
  %v746 = vpop.permute.xlu0 %745
  %747 = vrot.lane.b32.xlu0 %v523, 126
  %v748 = vpop.permute.xlu0 %747
  %749 = vrot.lane.b32.xlu0 %v524, 126
  %v750 = vpop.permute.xlu0 %749
  %751 = vrot.lane.b32.xlu0 %v525, 126
  %v752 = vpop.permute.xlu0 %751
  %753 = vrot.lane.b32.xlu0 %v526, 126
  %v754 = vpop.permute.xlu0 %753
  %755 = vrot.lane.b32.xlu0 %v527, 126
  %v756 = vpop.permute.xlu0 %755
  %757 = vrot.lane.b32.xlu0 %v528, 126
  %v758 = vpop.permute.xlu0 %757
  %759 = vrot.lane.b32.xlu0 %v529, 126
  %v760 = vpop.permute.xlu0 %759
  %761 = vrot.lane.b32.xlu0 %v530, 126
  %v762 = vpop.permute.xlu0 %761
  %763 = vrot.lane.b32.xlu0 %v531, 126
  %v764 = vpop.permute.xlu0 %763
  %765 = vrot.lane.b32.xlu0 %v532, 126
  %v766 = vpop.permute.xlu0 %765
  %767 = vrot.lane.b32.xlu0 %v533, 126
  %v768 = vpop.permute.xlu0 %767
  %769 = vrot.lane.b32.xlu0 %v534, 126
  %v770 = vpop.permute.xlu0 %769
  %771 = vrot.lane.b32.xlu0 %v535, 126
  %v772 = vpop.permute.xlu0 %771
  %773 = vrot.lane.b32.xlu0 %v536, 126
  %v774 = vpop.permute.xlu0 %773
  %775 = vrot.lane.b32.xlu0 %v537, 126
  %v776 = vpop.permute.xlu0 %775
  %777 = vrot.lane.b32.xlu0 %v538, 126
  %v778 = vpop.permute.xlu0 %777
  %779 = vrot.lane.b32.xlu0 %v539, 126
  %v780 = vpop.permute.xlu0 %779
  %781 = vrot.lane.b32.xlu0 %v540, 126
  %v782 = vpop.permute.xlu0 %781
  %783 = vrot.lane.b32.xlu0 %v541, 126
  %v784 = vpop.permute.xlu0 %783
  %785 = vrot.lane.b32.xlu0 %v542, 126
  %v786 = vpop.permute.xlu0 %785
  %787 = vrot.lane.b32.xlu0 %v543, 126
  %v788 = vpop.permute.xlu0 %787
  %789 = vrot.lane.b32.xlu0 %v544, 126
  %v790 = vpop.permute.xlu0 %789
  %791 = vrot.lane.b32.xlu0 %v545, 126
  %v792 = vpop.permute.xlu0 %791
  %793 = vrot.lane.b32.xlu0 %v546, 126
  %v794 = vpop.permute.xlu0 %793
  %795 = vrot.lane.b32.xlu0 %v547, 126
  %v796 = vpop.permute.xlu0 %795
  %797 = vrot.lane.b32.xlu0 %v548, 126
  %v798 = vpop.permute.xlu0 %797
  %799 = vrot.lane.b32.xlu0 %v549, 126
  %v800 = vpop.permute.xlu0 %799
  %801 = vrot.lane.b32.xlu0 %v550, 126
  %v802 = vpop.permute.xlu0 %801
  %803 = vrot.lane.b32.xlu0 %v551, 126
  %v804 = vpop.permute.xlu0 %803
  %805 = vrot.lane.b32.xlu0 %v552, 126
  %v806 = vpop.permute.xlu0 %805
  %807 = vrot.lane.b32.xlu0 %v553, 126
  %v808 = vpop.permute.xlu0 %807
  %809 = vrot.lane.b32.xlu0 %v554, 126
  %v810 = vpop.permute.xlu0 %809
  %811 = vrot.lane.b32.xlu0 %v555, 126
  %v812 = vpop.permute.xlu0 %811
  %877 = vst.msk [vmem:[%s4] sm:$0xf] %vm556, %v686
  %878 = vst.msk [vmem:[%s4 + $0x4] sm:$0xf] %vm556, %v688
  %879 = vst.msk [vmem:[%s4 + $0x8] sm:$0xf] %vm556, %v690
  %880 = vst.msk [vmem:[%s4 + $0xc] sm:$0xf] %vm556, %v692
  %881 = vst.msk [vmem:[%s4 + $0x10] sm:$0xf] %vm556, %v694
  %882 = vst.msk [vmem:[%s4 + $0x14] sm:$0xf] %vm556, %v696
  %883 = vst.msk [vmem:[%s4 + $0x18] sm:$0xf] %vm556, %v698
  %884 = vst.msk [vmem:[%s4 + $0x1c] sm:$0xf] %vm556, %v700
  %885 = vst.msk [vmem:[%s4 + $0x20] sm:$0xf] %vm556, %v702
  %886 = vst.msk [vmem:[%s4 + $0x24] sm:$0xf] %vm556, %v704
  %887 = vst.msk [vmem:[%s4 + $0x28] sm:$0xf] %vm556, %v706
  %888 = vst.msk [vmem:[%s4 + $0x2c] sm:$0xf] %vm556, %v708
  %889 = vst.msk [vmem:[%s4 + $0x30] sm:$0xf] %vm556, %v710
  %890 = vst.msk [vmem:[%s4 + $0x34] sm:$0xf] %vm556, %v712
  %891 = vst.msk [vmem:[%s4 + $0x38] sm:$0xf] %vm556, %v714
  %892 = vst.msk [vmem:[%s4 + $0x3c] sm:$0xf] %vm556, %v716
  %893 = vst.msk [vmem:[%s4 + $0x40] sm:$0xf] %vm556, %v718
  %894 = vst.msk [vmem:[%s4 + $0x44] sm:$0xf] %vm556, %v720
  %895 = vst.msk [vmem:[%s4 + $0x48] sm:$0xf] %vm556, %v722
  %896 = vst.msk [vmem:[%s4 + $0x4c] sm:$0xf] %vm556, %v724
  %897 = vst.msk [vmem:[%s4 + $0x50] sm:$0xf] %vm556, %v726
  %898 = vst.msk [vmem:[%s4 + $0x54] sm:$0xf] %vm556, %v728
  %899 = vst.msk [vmem:[%s4 + $0x58] sm:$0xf] %vm556, %v730
  %900 = vst.msk [vmem:[%s4 + $0x5c] sm:$0xf] %vm556, %v732
  %901 = vst.msk [vmem:[%s4 + $0x60] sm:$0xf] %vm556, %v734
  %902 = vst.msk [vmem:[%s4 + $0x64] sm:$0xf] %vm556, %v736
  %903 = vst.msk [vmem:[%s4 + $0x68] sm:$0xf] %vm556, %v738
  %904 = vst.msk [vmem:[%s4 + $0x6c] sm:$0xf] %vm556, %v740
  %905 = vst.msk [vmem:[%s4 + $0x70] sm:$0xf] %vm556, %v742
  %906 = vst.msk [vmem:[%s4 + $0x74] sm:$0xf] %vm556, %v744
  %907 = vst.msk [vmem:[%s4 + $0x78] sm:$0xf] %vm556, %v746
  %908 = vst.msk [vmem:[%s4 + $0x7c] sm:$0xf] %vm556, %v748
  %909 = vst.msk [vmem:[%s4 + $0x80] sm:$0xf] %vm556, %v750
  %910 = vst.msk [vmem:[%s4 + $0x84] sm:$0xf] %vm556, %v752
  %911 = vst.msk [vmem:[%s4 + $0x88] sm:$0xf] %vm556, %v754
  %912 = vst.msk [vmem:[%s4 + $0x8c] sm:$0xf] %vm556, %v756
  %913 = vst.msk [vmem:[%s4 + $0x90] sm:$0xf] %vm556, %v758
  %914 = vst.msk [vmem:[%s4 + $0x94] sm:$0xf] %vm556, %v760
  %915 = vst.msk [vmem:[%s4 + $0x98] sm:$0xf] %vm556, %v762
  %916 = vst.msk [vmem:[%s4 + $0x9c] sm:$0xf] %vm556, %v764
  %917 = vst.msk [vmem:[%s4 + $0xa0] sm:$0xf] %vm556, %v766
  %918 = vst.msk [vmem:[%s4 + $0xa4] sm:$0xf] %vm556, %v768
  %919 = vst.msk [vmem:[%s4 + $0xa8] sm:$0xf] %vm556, %v770
  %920 = vst.msk [vmem:[%s4 + $0xac] sm:$0xf] %vm556, %v772
  %921 = vst.msk [vmem:[%s4 + $0xb0] sm:$0xf] %vm556, %v774
  %922 = vst.msk [vmem:[%s4 + $0xb4] sm:$0xf] %vm556, %v776
  %923 = vst.msk [vmem:[%s4 + $0xb8] sm:$0xf] %vm556, %v778
  %924 = vst.msk [vmem:[%s4 + $0xbc] sm:$0xf] %vm556, %v780
  %925 = vst.msk [vmem:[%s4 + $0xc0] sm:$0xf] %vm556, %v782
  %926 = vst.msk [vmem:[%s4 + $0xc4] sm:$0xf] %vm556, %v784
  %927 = vst.msk [vmem:[%s4 + $0xc8] sm:$0xf] %vm556, %v786
  %928 = vst.msk [vmem:[%s4 + $0xcc] sm:$0xf] %vm556, %v788
  %929 = vst.msk [vmem:[%s4 + $0xd0] sm:$0xf] %vm556, %v790
  %930 = vst.msk [vmem:[%s4 + $0xd4] sm:$0xf] %vm556, %v792
  %931 = vst.msk [vmem:[%s4 + $0xd8] sm:$0xf] %vm556, %v794
  %932 = vst.msk [vmem:[%s4 + $0xdc] sm:$0xf] %vm556, %v796
  %933 = vst.msk [vmem:[%s4 + $0xe0] sm:$0xf] %vm556, %v798
  %934 = vst.msk [vmem:[%s4 + $0xe4] sm:$0xf] %vm556, %v800
  %935 = vst.msk [vmem:[%s4 + $0xe8] sm:$0xf] %vm556, %v802
  %936 = vst.msk [vmem:[%s4 + $0xec] sm:$0xf] %vm556, %v804
  %937 = vst.msk [vmem:[%s4 + $0xf0] sm:$0xf] %vm556, %v806
  %938 = vst.msk [vmem:[%s4 + $0xf4] sm:$0xf] %vm556, %v808
  %939 = vst.msk [vmem:[%s4 + $0xf8] sm:$0xf] %vm556, %v810
  %940 = vst.msk [vmem:[%s4 + $0xfc] sm:$0xf] %vm556, %v812
  %941 = vrot.lane.b32.xlu0 %v492, 124
  %v942 = vpop.permute.xlu0 %941
  %943 = vrot.lane.b32.xlu0 %v493, 124
  %v944 = vpop.permute.xlu0 %943
  %945 = vrot.lane.b32.xlu0 %v494, 124
  %v946 = vpop.permute.xlu0 %945
  %947 = vrot.lane.b32.xlu0 %v495, 124
  %v948 = vpop.permute.xlu0 %947
  %949 = vrot.lane.b32.xlu0 %v496, 124
  %v950 = vpop.permute.xlu0 %949
  %951 = vrot.lane.b32.xlu0 %v497, 124
  %v952 = vpop.permute.xlu0 %951
  %953 = vrot.lane.b32.xlu0 %v498, 124
  %v954 = vpop.permute.xlu0 %953
  %955 = vrot.lane.b32.xlu0 %v499, 124
  %v956 = vpop.permute.xlu0 %955
  %957 = vrot.lane.b32.xlu0 %v500, 124
  %v958 = vpop.permute.xlu0 %957
  %959 = vrot.lane.b32.xlu0 %v501, 124
  %v960 = vpop.permute.xlu0 %959
  %961 = vrot.lane.b32.xlu0 %v502, 124
  %v962 = vpop.permute.xlu0 %961
  %963 = vrot.lane.b32.xlu0 %v503, 124
  %v964 = vpop.permute.xlu0 %963
  %965 = vrot.lane.b32.xlu0 %v504, 124
  %v966 = vpop.permute.xlu0 %965
  %967 = vrot.lane.b32.xlu0 %v505, 124
  %v968 = vpop.permute.xlu0 %967
  %969 = vrot.lane.b32.xlu0 %v506, 124
  %v970 = vpop.permute.xlu0 %969
  %971 = vrot.lane.b32.xlu0 %v507, 124
  %v972 = vpop.permute.xlu0 %971
  %973 = vrot.lane.b32.xlu0 %v508, 124
  %v974 = vpop.permute.xlu0 %973
  %975 = vrot.lane.b32.xlu0 %v509, 124
  %v976 = vpop.permute.xlu0 %975
  %977 = vrot.lane.b32.xlu0 %v510, 124
  %v978 = vpop.permute.xlu0 %977
  %979 = vrot.lane.b32.xlu0 %v511, 124
  %v980 = vpop.permute.xlu0 %979
  %981 = vrot.lane.b32.xlu0 %v512, 124
  %v982 = vpop.permute.xlu0 %981
  %983 = vrot.lane.b32.xlu0 %v513, 124
  %v984 = vpop.permute.xlu0 %983
  %985 = vrot.lane.b32.xlu0 %v514, 124
  %v986 = vpop.permute.xlu0 %985
  %987 = vrot.lane.b32.xlu0 %v515, 124
  %v988 = vpop.permute.xlu0 %987
  %989 = vrot.lane.b32.xlu0 %v516, 124
  %v990 = vpop.permute.xlu0 %989
  %991 = vrot.lane.b32.xlu0 %v517, 124
  %v992 = vpop.permute.xlu0 %991
  %993 = vrot.lane.b32.xlu0 %v518, 124
  %v994 = vpop.permute.xlu0 %993
  %995 = vrot.lane.b32.xlu0 %v519, 124
  %v996 = vpop.permute.xlu0 %995
  %997 = vrot.lane.b32.xlu0 %v520, 124
  %v998 = vpop.permute.xlu0 %997
  %999 = vrot.lane.b32.xlu0 %v521, 124
  %v1000 = vpop.permute.xlu0 %999
  %1001 = vrot.lane.b32.xlu0 %v522, 124
  %v1002 = vpop.permute.xlu0 %1001
  %1003 = vrot.lane.b32.xlu0 %v523, 124
  %v1004 = vpop.permute.xlu0 %1003
  %1005 = vrot.lane.b32.xlu0 %v524, 124
  %v1006 = vpop.permute.xlu0 %1005
  %1007 = vrot.lane.b32.xlu0 %v525, 124
  %v1008 = vpop.permute.xlu0 %1007
  %1009 = vrot.lane.b32.xlu0 %v526, 124
  %v1010 = vpop.permute.xlu0 %1009
  %1011 = vrot.lane.b32.xlu0 %v527, 124
  %v1012 = vpop.permute.xlu0 %1011
  %1013 = vrot.lane.b32.xlu0 %v528, 124
  %v1014 = vpop.permute.xlu0 %1013
  %1015 = vrot.lane.b32.xlu0 %v529, 124
  %v1016 = vpop.permute.xlu0 %1015
  %1017 = vrot.lane.b32.xlu0 %v530, 124
  %v1018 = vpop.permute.xlu0 %1017
  %1019 = vrot.lane.b32.xlu0 %v531, 124
  %v1020 = vpop.permute.xlu0 %1019
  %1021 = vrot.lane.b32.xlu0 %v532, 124
  %v1022 = vpop.permute.xlu0 %1021
  %1023 = vrot.lane.b32.xlu0 %v533, 124
  %v1024 = vpop.permute.xlu0 %1023
  %1025 = vrot.lane.b32.xlu0 %v534, 124
  %v1026 = vpop.permute.xlu0 %1025
  %1027 = vrot.lane.b32.xlu0 %v535, 124
  %v1028 = vpop.permute.xlu0 %1027
  %1029 = vrot.lane.b32.xlu0 %v536, 124
  %v1030 = vpop.permute.xlu0 %1029
  %1031 = vrot.lane.b32.xlu0 %v537, 124
  %v1032 = vpop.permute.xlu0 %1031
  %1033 = vrot.lane.b32.xlu0 %v538, 124
  %v1034 = vpop.permute.xlu0 %1033
  %1035 = vrot.lane.b32.xlu0 %v539, 124
  %v1036 = vpop.permute.xlu0 %1035
  %1037 = vrot.lane.b32.xlu0 %v540, 124
  %v1038 = vpop.permute.xlu0 %1037
  %1039 = vrot.lane.b32.xlu0 %v541, 124
  %v1040 = vpop.permute.xlu0 %1039
  %1041 = vrot.lane.b32.xlu0 %v542, 124
  %v1042 = vpop.permute.xlu0 %1041
  %1043 = vrot.lane.b32.xlu0 %v543, 124
  %v1044 = vpop.permute.xlu0 %1043
  %1045 = vrot.lane.b32.xlu0 %v544, 124
  %v1046 = vpop.permute.xlu0 %1045
  %1047 = vrot.lane.b32.xlu0 %v545, 124
  %v1048 = vpop.permute.xlu0 %1047
  %1049 = vrot.lane.b32.xlu0 %v546, 124
  %v1050 = vpop.permute.xlu0 %1049
  %1051 = vrot.lane.b32.xlu0 %v547, 124
  %v1052 = vpop.permute.xlu0 %1051
  %1053 = vrot.lane.b32.xlu0 %v548, 124
  %v1054 = vpop.permute.xlu0 %1053
  %1055 = vrot.lane.b32.xlu0 %v549, 124
  %v1056 = vpop.permute.xlu0 %1055
  %1057 = vrot.lane.b32.xlu0 %v550, 124
  %v1058 = vpop.permute.xlu0 %1057
  %1059 = vrot.lane.b32.xlu0 %v551, 124
  %v1060 = vpop.permute.xlu0 %1059
  %1061 = vrot.lane.b32.xlu0 %v552, 124
  %v1062 = vpop.permute.xlu0 %1061
  %1063 = vrot.lane.b32.xlu0 %v553, 124
  %v1064 = vpop.permute.xlu0 %1063
  %1065 = vrot.lane.b32.xlu0 %v554, 124
  %v1066 = vpop.permute.xlu0 %1065
  %1067 = vrot.lane.b32.xlu0 %v555, 124
  %v1068 = vpop.permute.xlu0 %1067
  %vm1133 = vcmask 27648
  %1134 = vst.msk [vmem:[%s5] sm:$0xf] %vm1133, %v942
  %1135 = vst.msk [vmem:[%s5 + $0x4] sm:$0xf] %vm1133, %v944
  %1136 = vst.msk [vmem:[%s5 + $0x8] sm:$0xf] %vm1133, %v946
  %1137 = vst.msk [vmem:[%s5 + $0xc] sm:$0xf] %vm1133, %v948
  %1138 = vst.msk [vmem:[%s5 + $0x10] sm:$0xf] %vm1133, %v950
  %1139 = vst.msk [vmem:[%s5 + $0x14] sm:$0xf] %vm1133, %v952
  %1140 = vst.msk [vmem:[%s5 + $0x18] sm:$0xf] %vm1133, %v954
  %1141 = vst.msk [vmem:[%s5 + $0x1c] sm:$0xf] %vm1133, %v956
  %1142 = vst.msk [vmem:[%s5 + $0x20] sm:$0xf] %vm1133, %v958
  %1143 = vst.msk [vmem:[%s5 + $0x24] sm:$0xf] %vm1133, %v960
  %1144 = vst.msk [vmem:[%s5 + $0x28] sm:$0xf] %vm1133, %v962
  %1145 = vst.msk [vmem:[%s5 + $0x2c] sm:$0xf] %vm1133, %v964
  %1146 = vst.msk [vmem:[%s5 + $0x30] sm:$0xf] %vm1133, %v966
  %1147 = vst.msk [vmem:[%s5 + $0x34] sm:$0xf] %vm1133, %v968
  %1148 = vst.msk [vmem:[%s5 + $0x38] sm:$0xf] %vm1133, %v970
  %1149 = vst.msk [vmem:[%s5 + $0x3c] sm:$0xf] %vm1133, %v972
  %1150 = vst.msk [vmem:[%s5 + $0x40] sm:$0xf] %vm1133, %v974
  %1151 = vst.msk [vmem:[%s5 + $0x44] sm:$0xf] %vm1133, %v976
  %1152 = vst.msk [vmem:[%s5 + $0x48] sm:$0xf] %vm1133, %v978
  %1153 = vst.msk [vmem:[%s5 + $0x4c] sm:$0xf] %vm1133, %v980
  %1154 = vst.msk [vmem:[%s5 + $0x50] sm:$0xf] %vm1133, %v982
  %1155 = vst.msk [vmem:[%s5 + $0x54] sm:$0xf] %vm1133, %v984
  %1156 = vst.msk [vmem:[%s5 + $0x58] sm:$0xf] %vm1133, %v986
  %1157 = vst.msk [vmem:[%s5 + $0x5c] sm:$0xf] %vm1133, %v988
  %1158 = vst.msk [vmem:[%s5 + $0x60] sm:$0xf] %vm1133, %v990
  %1159 = vst.msk [vmem:[%s5 + $0x64] sm:$0xf] %vm1133, %v992
  %1160 = vst.msk [vmem:[%s5 + $0x68] sm:$0xf] %vm1133, %v994
  %1161 = vst.msk [vmem:[%s5 + $0x6c] sm:$0xf] %vm1133, %v996
  %1162 = vst.msk [vmem:[%s5 + $0x70] sm:$0xf] %vm1133, %v998
  %1163 = vst.msk [vmem:[%s5 + $0x74] sm:$0xf] %vm1133, %v1000
  %1164 = vst.msk [vmem:[%s5 + $0x78] sm:$0xf] %vm1133, %v1002
  %1165 = vst.msk [vmem:[%s5 + $0x7c] sm:$0xf] %vm1133, %v1004
  %1166 = vst.msk [vmem:[%s5 + $0x80] sm:$0xf] %vm1133, %v1006
  %1167 = vst.msk [vmem:[%s5 + $0x84] sm:$0xf] %vm1133, %v1008
  %1168 = vst.msk [vmem:[%s5 + $0x88] sm:$0xf] %vm1133, %v1010
  %1169 = vst.msk [vmem:[%s5 + $0x8c] sm:$0xf] %vm1133, %v1012
  %1170 = vst.msk [vmem:[%s5 + $0x90] sm:$0xf] %vm1133, %v1014
  %1171 = vst.msk [vmem:[%s5 + $0x94] sm:$0xf] %vm1133, %v1016
  %1172 = vst.msk [vmem:[%s5 + $0x98] sm:$0xf] %vm1133, %v1018
  %1173 = vst.msk [vmem:[%s5 + $0x9c] sm:$0xf] %vm1133, %v1020
  %1174 = vst.msk [vmem:[%s5 + $0xa0] sm:$0xf] %vm1133, %v1022
  %1175 = vst.msk [vmem:[%s5 + $0xa4] sm:$0xf] %vm1133, %v1024
  %1176 = vst.msk [vmem:[%s5 + $0xa8] sm:$0xf] %vm1133, %v1026
  %1177 = vst.msk [vmem:[%s5 + $0xac] sm:$0xf] %vm1133, %v1028
  %1178 = vst.msk [vmem:[%s5 + $0xb0] sm:$0xf] %vm1133, %v1030
  %1179 = vst.msk [vmem:[%s5 + $0xb4] sm:$0xf] %vm1133, %v1032
  %1180 = vst.msk [vmem:[%s5 + $0xb8] sm:$0xf] %vm1133, %v1034
  %1181 = vst.msk [vmem:[%s5 + $0xbc] sm:$0xf] %vm1133, %v1036
  %1182 = vst.msk [vmem:[%s5 + $0xc0] sm:$0xf] %vm1133, %v1038
  %1183 = vst.msk [vmem:[%s5 + $0xc4] sm:$0xf] %vm1133, %v1040
  %1184 = vst.msk [vmem:[%s5 + $0xc8] sm:$0xf] %vm1133, %v1042
  %1185 = vst.msk [vmem:[%s5 + $0xcc] sm:$0xf] %vm1133, %v1044
  %1186 = vst.msk [vmem:[%s5 + $0xd0] sm:$0xf] %vm1133, %v1046
  %1187 = vst.msk [vmem:[%s5 + $0xd4] sm:$0xf] %vm1133, %v1048
  %1188 = vst.msk [vmem:[%s5 + $0xd8] sm:$0xf] %vm1133, %v1050
  %1189 = vst.msk [vmem:[%s5 + $0xdc] sm:$0xf] %vm1133, %v1052
  %1190 = vst.msk [vmem:[%s5 + $0xe0] sm:$0xf] %vm1133, %v1054
  %1191 = vst.msk [vmem:[%s5 + $0xe4] sm:$0xf] %vm1133, %v1056
  %1192 = vst.msk [vmem:[%s5 + $0xe8] sm:$0xf] %vm1133, %v1058
  %1193 = vst.msk [vmem:[%s5 + $0xec] sm:$0xf] %vm1133, %v1060
  %1194 = vst.msk [vmem:[%s5 + $0xf0] sm:$0xf] %vm1133, %v1062
  %1195 = vst.msk [vmem:[%s5 + $0xf4] sm:$0xf] %vm1133, %v1064
  %1196 = vst.msk [vmem:[%s5 + $0xf8] sm:$0xf] %vm1133, %v1066
  %1197 = vst.msk [vmem:[%s5 + $0xfc] sm:$0xf] %vm1133, %v1068
  // Predicated region
  $region14: #{tpu_custom_call.1} parent=0 // pred_check
    _
  $region15: #{tpu_custom_call.1} parent=0 // pred_check_branch
    %1199 = sbr.rel (0) target = $region17
  $region16: #{tpu_custom_call.1} parent=0 // pred_region
    _
  $region17: #{tpu_custom_call.1} parent=0 // pred_fallthru
    _
  // Predicated region
  $region18: #{tpu_custom_call.1} parent=0 // pred_check
    _
  $region19: #{tpu_custom_call.1} parent=0 // pred_check_branch
    %1201 = sbr.rel (0) target = $region21
  $region20: #{tpu_custom_call.1} parent=0 // pred_region
    _
  $region21: #{tpu_custom_call.1} parent=0 // pred_fallthru
    _
  // Predicated region
  $region22: #{tpu_custom_call.1} parent=0 // pred_check
    _
  $region23: #{tpu_custom_call.1} parent=0 // pred_check_branch
    %1203 = sbr.rel (0) target = $region25
  $region24: #{tpu_custom_call.1} parent=0 // pred_region
    _
  $region25: #{tpu_custom_call.1} parent=0 // pred_fallthru
    _
  // Predicated region
  $region26: #{tpu_custom_call.1} parent=0 // pred_check
    _
  $region27: #{tpu_custom_call.1} parent=0 // pred_check_branch
    %1205 = sbr.rel (0) target = $region29
  $region28: #{tpu_custom_call.1} parent=0 // pred_region
    _
  $region29: #{tpu_custom_call.1} parent=0 // pred_fallthru
    _
  // Predicated region
  $region30: #{tpu_custom_call.1} parent=0 // pred_check
    _
  $region31: #{tpu_custom_call.1} parent=0 // pred_check_branch
    %1207 = sbr.rel (0) target = $region33
  $region32: #{tpu_custom_call.1} parent=0 // pred_region
    _
  $region33: #{tpu_custom_call.1} parent=0 // pred_fallthru
    _
  // Predicated region
  $region34: #{tpu_custom_call.1} parent=0 // pred_check
    _
  $region35: #{tpu_custom_call.1} parent=0 // pred_check_branch
    %1209 = sbr.rel (0) target = $region37
  $region36: #{tpu_custom_call.1} parent=0 // pred_region
    _
  $region37: #{tpu_custom_call.1} parent=0 // pred_fallthru
    _

// kernel: tpu_custom_call.1
$region0: #{tpu_custom_call.1}
  #allocation0 [shape = 'u32[]', space=smem, size = 0x4, offset = 0x4, fixed_abs, tag = 'smem constant byte address 0x4 - core index']
  #allocation1 [shape = 'u32[72,128]{1,0:T(1,128)}', space=vmem, size = 0x9000, scoped, tag = 'internal scratch']
  %s0 = inlined_call_operand.vmem [shape: f32[512,4], index: 0, kind: input, shape index: {}]
  %s1 = inlined_call_operand.vmem [shape: f32[4,8], index: 1, kind: input, shape index: {}]
  %s2 = inlined_call_operand.vmem [shape: f32[1,8], index: 2, kind: input, shape index: {}]
  %s3 = inlined_call_operand.vmem [shape: bf16[512,2], index: 3, kind: output, shape index: {0}]
  %s4 = inlined_call_operand.vmem [shape: bf16[512,2], index: 4, kind: output, shape index: {1}]
  %s5 = inlined_call_operand.vmem [shape: bf16[512,4], index: 5, kind: output, shape index: {2}]
  %6 = xla_tuple %s3, %s4, %s5
  %s7 = sld [smem:[#allocation0]]
  $region38: #{tpu_custom_call.1} parent=0
    _
  %s9 = ssub.s32 1, %s7
  %s10 = scalar_select 0, %s9, %s7
  // Predicated region
  $region2: #{tpu_custom_call.1} parent=0 // pred_check
    _
  $region3: #{tpu_custom_call.1} parent=0 // pred_check_branch
    %12 = sbr.rel (0) target = $region5
  $region4: #{tpu_custom_call.1} parent=0 // pred_region
    _
  $region5: #{tpu_custom_call.1} parent=0 // pred_fallthru
    _
  // Predicated region
  $region6: #{tpu_custom_call.1} parent=0 // pred_check
    _
  $region7: #{tpu_custom_call.1} parent=0 // pred_check_branch
    %14 = sbr.rel (0) target = $region9
  $region8: #{tpu_custom_call.1} parent=0 // pred_region
    _
  $region9: #{tpu_custom_call.1} parent=0 // pred_fallthru
    _
  // Predicated region
  $region10: #{tpu_custom_call.1} parent=0 // pred_check
    _
  $region11: #{tpu_custom_call.1} parent=0 // pred_check_branch
    %16 = sbr.rel (0) target = $region13
  $region12: #{tpu_custom_call.1} parent=0 // pred_region
    _
  $region13: #{tpu_custom_call.1} parent=0 // pred_fallthru
    _
  %v17 = vld [vmem:[%s0] sm:$0xff]
  %v18 = vld [vmem:[%s0 + $0x8] sm:$0xff]
  %v19 = vld [vmem:[%s0 + $0x10] sm:$0xff]
  %v20 = vld [vmem:[%s0 + $0x18] sm:$0xff]
  %v21 = vld [vmem:[%s0 + $0x20] sm:$0xff]
  %v22 = vld [vmem:[%s0 + $0x28] sm:$0xff]
  %v23 = vld [vmem:[%s0 + $0x30] sm:$0xff]
  %v24 = vld [vmem:[%s0 + $0x38] sm:$0xff]
  %v25 = vld [vmem:[%s0 + $0x40] sm:$0xff]
  %v26 = vld [vmem:[%s0 + $0x48] sm:$0xff]
  %v27 = vld [vmem:[%s0 + $0x50] sm:$0xff]
  %v28 = vld [vmem:[%s0 + $0x58] sm:$0xff]
  %v29 = vld [vmem:[%s0 + $0x60] sm:$0xff]
  %v30 = vld [vmem:[%s0 + $0x68] sm:$0xff]
  %v31 = vld [vmem:[%s0 + $0x70] sm:$0xff]
  %v32 = vld [vmem:[%s0 + $0x78] sm:$0xff]
  %v33 = vld [vmem:[%s0 + $0x80] sm:$0xff]
  %v34 = vld [vmem:[%s0 + $0x88] sm:$0xff]
  %v35 = vld [vmem:[%s0 + $0x90] sm:$0xff]
  %v36 = vld [vmem:[%s0 + $0x98] sm:$0xff]
  %v37 = vld [vmem:[%s0 + $0xa0] sm:$0xff]
  %v38 = vld [vmem:[%s0 + $0xa8] sm:$0xff]
  %v39 = vld [vmem:[%s0 + $0xb0] sm:$0xff]
  %v40 = vld [vmem:[%s0 + $0xb8] sm:$0xff]
  %v41 = vld [vmem:[%s0 + $0xc0] sm:$0xff]
  %v42 = vld [vmem:[%s0 + $0xc8] sm:$0xff]
  %v43 = vld [vmem:[%s0 + $0xd0] sm:$0xff]
  %v44 = vld [vmem:[%s0 + $0xd8] sm:$0xff]
  %v45 = vld [vmem:[%s0 + $0xe0] sm:$0xff]
  %v46 = vld [vmem:[%s0 + $0xe8] sm:$0xff]
  %v47 = vld [vmem:[%s0 + $0xf0] sm:$0xff]
  %v48 = vld [vmem:[%s0 + $0xf8] sm:$0xff]
  %v49 = vld [vmem:[%s0 + $0x100] sm:$0xff]
  %v50 = vld [vmem:[%s0 + $0x108] sm:$0xff]
  %v51 = vld [vmem:[%s0 + $0x110] sm:$0xff]
  %v52 = vld [vmem:[%s0 + $0x118] sm:$0xff]
  %v53 = vld [vmem:[%s0 + $0x120] sm:$0xff]
  %v54 = vld [vmem:[%s0 + $0x128] sm:$0xff]
  %v55 = vld [vmem:[%s0 + $0x130] sm:$0xff]
  %v56 = vld [vmem:[%s0 + $0x138] sm:$0xff]
  %v57 = vld [vmem:[%s0 + $0x140] sm:$0xff]
  %v58 = vld [vmem:[%s0 + $0x148] sm:$0xff]
  %v59 = vld [vmem:[%s0 + $0x150] sm:$0xff]
  %v60 = vld [vmem:[%s0 + $0x158] sm:$0xff]
  %v61 = vld [vmem:[%s0 + $0x160] sm:$0xff]
  %v62 = vld [vmem:[%s0 + $0x168] sm:$0xff]
  %v63 = vld [vmem:[%s0 + $0x170] sm:$0xff]
  %v64 = vld [vmem:[%s0 + $0x178] sm:$0xff]
  %v65 = vld [vmem:[%s0 + $0x180] sm:$0xff]
  %v66 = vld [vmem:[%s0 + $0x188] sm:$0xff]
  %v67 = vld [vmem:[%s0 + $0x190] sm:$0xff]
  %v68 = vld [vmem:[%s0 + $0x198] sm:$0xff]
  %v69 = vld [vmem:[%s0 + $0x1a0] sm:$0xff]
  %v70 = vld [vmem:[%s0 + $0x1a8] sm:$0xff]
  %v71 = vld [vmem:[%s0 + $0x1b0] sm:$0xff]
  %v72 = vld [vmem:[%s0 + $0x1b8] sm:$0xff]
  %v73 = vld [vmem:[%s0 + $0x1c0] sm:$0xff]
  %v74 = vld [vmem:[%s0 + $0x1c8] sm:$0xff]
  %v75 = vld [vmem:[%s0 + $0x1d0] sm:$0xff]
  %v76 = vld [vmem:[%s0 + $0x1d8] sm:$0xff]
  %v77 = vld [vmem:[%s0 + $0x1e0] sm:$0xff]
  %v78 = vld [vmem:[%s0 + $0x1e8] sm:$0xff]
  %v79 = vld [vmem:[%s0 + $0x1f0] sm:$0xff]
  %v80 = vld [vmem:[%s0 + $0x1f8] sm:$0xff]
  %v81 = vld [vmem:[%s1] sm:$0xf]
  %v82 = vld [vmem:[%s2] sm:$0x1]
  %v84 = vperm.slane %v82, 0
  %vm86 = vcmask 31744
  %v88 = vsel %vm86, %v17, 0
  %v91 = vsel %vm86, %v18, 0
  %v94 = vsel %vm86, %v19, 0
  %v97 = vsel %vm86, %v20, 0
  %v100 = vsel %vm86, %v21, 0
  %v103 = vsel %vm86, %v22, 0
  %v106 = vsel %vm86, %v23, 0
  %v109 = vsel %vm86, %v24, 0
  %v112 = vsel %vm86, %v25, 0
  %v115 = vsel %vm86, %v26, 0
  %v118 = vsel %vm86, %v27, 0
  %v121 = vsel %vm86, %v28, 0
  %v124 = vsel %vm86, %v29, 0
  %v127 = vsel %vm86, %v30, 0
  %v130 = vsel %vm86, %v31, 0
  %v133 = vsel %vm86, %v32, 0
  %v136 = vsel %vm86, %v33, 0
  %v139 = vsel %vm86, %v34, 0
  %v142 = vsel %vm86, %v35, 0
  %v145 = vsel %vm86, %v36, 0
  %v148 = vsel %vm86, %v37, 0
  %v151 = vsel %vm86, %v38, 0
  %v154 = vsel %vm86, %v39, 0
  %v157 = vsel %vm86, %v40, 0
  %v160 = vsel %vm86, %v41, 0
  %v163 = vsel %vm86, %v42, 0
  %v166 = vsel %vm86, %v43, 0
  %v169 = vsel %vm86, %v44, 0
  %v172 = vsel %vm86, %v45, 0
  %v175 = vsel %vm86, %v46, 0
  %v178 = vsel %vm86, %v47, 0
  %v181 = vsel %vm86, %v48, 0
  %v184 = vsel %vm86, %v49, 0
  %v187 = vsel %vm86, %v50, 0
  %v190 = vsel %vm86, %v51, 0
  %v193 = vsel %vm86, %v52, 0
  %v196 = vsel %vm86, %v53, 0
  %v199 = vsel %vm86, %v54, 0
  %v202 = vsel %vm86, %v55, 0
  %v205 = vsel %vm86, %v56, 0
  %v208 = vsel %vm86, %v57, 0
  %v211 = vsel %vm86, %v58, 0
  %v214 = vsel %vm86, %v59, 0
  %v217 = vsel %vm86, %v60, 0
  %v220 = vsel %vm86, %v61, 0
  %v223 = vsel %vm86, %v62, 0
  %v226 = vsel %vm86, %v63, 0
  %v229 = vsel %vm86, %v64, 0
  %v232 = vsel %vm86, %v65, 0
  %v235 = vsel %vm86, %v66, 0
  %v238 = vsel %vm86, %v67, 0
  %v241 = vsel %vm86, %v68, 0
  %v244 = vsel %vm86, %v69, 0
  %v247 = vsel %vm86, %v70, 0
  %v250 = vsel %vm86, %v71, 0
  %v253 = vsel %vm86, %v72, 0
  %v256 = vsel %vm86, %v73, 0
  %v259 = vsel %vm86, %v74, 0
  %v262 = vsel %vm86, %v75, 0
  %v265 = vsel %vm86, %v76, 0
  %v268 = vsel %vm86, %v77, 0
  %v271 = vsel %vm86, %v78, 0
  %v274 = vsel %vm86, %v79, 0
  %v277 = vsel %vm86, %v80, 0
  %vm279 = vcmask 1043456
  %v281 = vsel %vm279, %v81, 0
  %283 = vmatpush.msra.mxu0 0.0
  %284 = vmatpush.msra.mxu0 0.0
  %285 = vmatpush.msra.mxu0 0.0
  %286 = vmatpush.msra.mxu0 0.0
  %287 = vmatpush.msra.mxu0 0.0
  %288 = vmatpush.msra.mxu0 0.0
  %289 = vmatpush.msra.mxu0 0.0
  %290 = vmatpush.msra.mxu0 0.0
  %291 = vmatpush.msra.mxu0 0.0
  %292 = vmatpush.msra.mxu0 0.0
  %293 = vmatpush.msra.mxu0 0.0
  %294 = vmatpush.msra.mxu0 0.0
  %295 = vmatpush.msra.mxu0 0.0
  %296 = vmatpush.msra.mxu0 0.0
  %297 = vmatpush.msra.mxu0 0.0
  %298 = vmatpush.msra.mxu0 %v281
  %299 = vmatmul.f32.gmra.mxu0 %v88
  %v300 = vpop.f32.mrf.mxu0
  %v301 = vadd.f32 %v84, %v300
  %302 = vmatmul.f32.gmra.mxu0 %v91
  %v303 = vpop.f32.mrf.mxu0
  %v304 = vadd.f32 %v84, %v303
  %305 = vmatmul.f32.gmra.mxu0 %v94
  %v306 = vpop.f32.mrf.mxu0
  %v307 = vadd.f32 %v84, %v306
  %308 = vmatmul.f32.gmra.mxu0 %v97
  %v309 = vpop.f32.mrf.mxu0
  %v310 = vadd.f32 %v84, %v309
  %311 = vmatmul.f32.gmra.mxu0 %v100
  %v312 = vpop.f32.mrf.mxu0
  %v313 = vadd.f32 %v84, %v312
  %314 = vmatmul.f32.gmra.mxu0 %v103
  %v315 = vpop.f32.mrf.mxu0
  %v316 = vadd.f32 %v84, %v315
  %317 = vmatmul.f32.gmra.mxu0 %v106
  %v318 = vpop.f32.mrf.mxu0
  %v319 = vadd.f32 %v84, %v318
  %320 = vmatmul.f32.gmra.mxu0 %v109
  %v321 = vpop.f32.mrf.mxu0
  %v322 = vadd.f32 %v84, %v321
  %323 = vmatmul.f32.gmra.mxu0 %v112
  %v324 = vpop.f32.mrf.mxu0
  %v325 = vadd.f32 %v84, %v324
  %326 = vmatmul.f32.gmra.mxu0 %v115
  %v327 = vpop.f32.mrf.mxu0
  %v328 = vadd.f32 %v84, %v327
  %329 = vmatmul.f32.gmra.mxu0 %v118
  %v330 = vpop.f32.mrf.mxu0
  %v331 = vadd.f32 %v84, %v330
  %332 = vmatmul.f32.gmra.mxu0 %v121
  %v333 = vpop.f32.mrf.mxu0
  %v334 = vadd.f32 %v84, %v333
  %335 = vmatmul.f32.gmra.mxu0 %v124
  %v336 = vpop.f32.mrf.mxu0
  %v337 = vadd.f32 %v84, %v336
  %338 = vmatmul.f32.gmra.mxu0 %v127
  %v339 = vpop.f32.mrf.mxu0
  %v340 = vadd.f32 %v84, %v339
  %341 = vmatmul.f32.gmra.mxu0 %v130
  %v342 = vpop.f32.mrf.mxu0
  %v343 = vadd.f32 %v84, %v342
  %344 = vmatmul.f32.gmra.mxu0 %v133
  %v345 = vpop.f32.mrf.mxu0
  %v346 = vadd.f32 %v84, %v345
  %347 = vmatmul.f32.gmra.mxu0 %v136
  %v348 = vpop.f32.mrf.mxu0
  %v349 = vadd.f32 %v84, %v348
  %350 = vmatmul.f32.gmra.mxu0 %v139
  %v351 = vpop.f32.mrf.mxu0
  %v352 = vadd.f32 %v84, %v351
  %353 = vmatmul.f32.gmra.mxu0 %v142
  %v354 = vpop.f32.mrf.mxu0
  %v355 = vadd.f32 %v84, %v354
  %356 = vmatmul.f32.gmra.mxu0 %v145
  %v357 = vpop.f32.mrf.mxu0
  %v358 = vadd.f32 %v84, %v357
  %359 = vmatmul.f32.gmra.mxu0 %v148
  %v360 = vpop.f32.mrf.mxu0
  %v361 = vadd.f32 %v84, %v360
  %362 = vmatmul.f32.gmra.mxu0 %v151
  %v363 = vpop.f32.mrf.mxu0
  %v364 = vadd.f32 %v84, %v363
  %365 = vmatmul.f32.gmra.mxu0 %v154
  %v366 = vpop.f32.mrf.mxu0
  %v367 = vadd.f32 %v84, %v366
  %368 = vmatmul.f32.gmra.mxu0 %v157
  %v369 = vpop.f32.mrf.mxu0
  %v370 = vadd.f32 %v84, %v369
  %371 = vmatmul.f32.gmra.mxu0 %v160
  %v372 = vpop.f32.mrf.mxu0
  %v373 = vadd.f32 %v84, %v372
  %374 = vmatmul.f32.gmra.mxu0 %v163
  %v375 = vpop.f32.mrf.mxu0
  %v376 = vadd.f32 %v84, %v375
  %377 = vmatmul.f32.gmra.mxu0 %v166
  %v378 = vpop.f32.mrf.mxu0
  %v379 = vadd.f32 %v84, %v378
  %380 = vmatmul.f32.gmra.mxu0 %v169
  %v381 = vpop.f32.mrf.mxu0
  %v382 = vadd.f32 %v84, %v381
  %383 = vmatmul.f32.gmra.mxu0 %v172
  %v384 = vpop.f32.mrf.mxu0
  %v385 = vadd.f32 %v84, %v384
  %386 = vmatmul.f32.gmra.mxu0 %v175
  %v387 = vpop.f32.mrf.mxu0
  %v388 = vadd.f32 %v84, %v387
  %389 = vmatmul.f32.gmra.mxu0 %v178
  %v390 = vpop.f32.mrf.mxu0
  %v391 = vadd.f32 %v84, %v390
  %392 = vmatmul.f32.gmra.mxu0 %v181
  %v393 = vpop.f32.mrf.mxu0
  %v394 = vadd.f32 %v84, %v393
  %395 = vmatmul.f32.gmra.mxu0 %v184
  %v396 = vpop.f32.mrf.mxu0
  %v397 = vadd.f32 %v84, %v396
  %398 = vmatmul.f32.gmra.mxu0 %v187
  %v399 = vpop.f32.mrf.mxu0
  %v400 = vadd.f32 %v84, %v399
  %401 = vmatmul.f32.gmra.mxu0 %v190
  %v402 = vpop.f32.mrf.mxu0
  %v403 = vadd.f32 %v84, %v402
  %404 = vmatmul.f32.gmra.mxu0 %v193
  %v405 = vpop.f32.mrf.mxu0
  %v406 = vadd.f32 %v84, %v405
  %407 = vmatmul.f32.gmra.mxu0 %v196
  %v408 = vpop.f32.mrf.mxu0
  %v409 = vadd.f32 %v84, %v408
  %410 = vmatmul.f32.gmra.mxu0 %v199
  %v411 = vpop.f32.mrf.mxu0
  %v412 = vadd.f32 %v84, %v411
  %413 = vmatmul.f32.gmra.mxu0 %v202
  %v414 = vpop.f32.mrf.mxu0
  %v415 = vadd.f32 %v84, %v414
  %416 = vmatmul.f32.gmra.mxu0 %v205
  %v417 = vpop.f32.mrf.mxu0
  %v418 = vadd.f32 %v84, %v417
  %419 = vmatmul.f32.gmra.mxu0 %v208
  %v420 = vpop.f32.mrf.mxu0
  %v421 = vadd.f32 %v84, %v420
  %422 = vmatmul.f32.gmra.mxu0 %v211
  %v423 = vpop.f32.mrf.mxu0
  %v424 = vadd.f32 %v84, %v423
  %425 = vmatmul.f32.gmra.mxu0 %v214
  %v426 = vpop.f32.mrf.mxu0
  %v427 = vadd.f32 %v84, %v426
  %428 = vmatmul.f32.gmra.mxu0 %v217
  %v429 = vpop.f32.mrf.mxu0
  %v430 = vadd.f32 %v84, %v429
  %431 = vmatmul.f32.gmra.mxu0 %v220
  %v432 = vpop.f32.mrf.mxu0
  %v433 = vadd.f32 %v84, %v432
  %434 = vmatmul.f32.gmra.mxu0 %v223
  %v435 = vpop.f32.mrf.mxu0
  %v436 = vadd.f32 %v84, %v435
  %437 = vmatmul.f32.gmra.mxu0 %v226
  %v438 = vpop.f32.mrf.mxu0
  %v439 = vadd.f32 %v84, %v438
  %440 = vmatmul.f32.gmra.mxu0 %v229
  %v441 = vpop.f32.mrf.mxu0
  %v442 = vadd.f32 %v84, %v441
  %443 = vmatmul.f32.gmra.mxu0 %v232
  %v444 = vpop.f32.mrf.mxu0
  %v445 = vadd.f32 %v84, %v444
  %446 = vmatmul.f32.gmra.mxu0 %v235
  %v447 = vpop.f32.mrf.mxu0
  %v448 = vadd.f32 %v84, %v447
  %449 = vmatmul.f32.gmra.mxu0 %v238
  %v450 = vpop.f32.mrf.mxu0
  %v451 = vadd.f32 %v84, %v450
  %452 = vmatmul.f32.gmra.mxu0 %v241
  %v453 = vpop.f32.mrf.mxu0
  %v454 = vadd.f32 %v84, %v453
  %455 = vmatmul.f32.gmra.mxu0 %v244
  %v456 = vpop.f32.mrf.mxu0
  %v457 = vadd.f32 %v84, %v456
  %458 = vmatmul.f32.gmra.mxu0 %v247
  %v459 = vpop.f32.mrf.mxu0
  %v460 = vadd.f32 %v84, %v459
  %461 = vmatmul.f32.gmra.mxu0 %v250
  %v462 = vpop.f32.mrf.mxu0
  %v463 = vadd.f32 %v84, %v462
  %464 = vmatmul.f32.gmra.mxu0 %v253
  %v465 = vpop.f32.mrf.mxu0
  %v466 = vadd.f32 %v84, %v465
  %467 = vmatmul.f32.gmra.mxu0 %v256
  %v468 = vpop.f32.mrf.mxu0
  %v469 = vadd.f32 %v84, %v468
  %470 = vmatmul.f32.gmra.mxu0 %v259
  %v471 = vpop.f32.mrf.mxu0
  %v472 = vadd.f32 %v84, %v471
  %473 = vmatmul.f32.gmra.mxu0 %v262
  %v474 = vpop.f32.mrf.mxu0
  %v475 = vadd.f32 %v84, %v474
  %476 = vmatmul.f32.gmra.mxu0 %v265
  %v477 = vpop.f32.mrf.mxu0
  %v478 = vadd.f32 %v84, %v477
  %479 = vmatmul.f32.gmra.mxu0 %v268
  %v480 = vpop.f32.mrf.mxu0
  %v481 = vadd.f32 %v84, %v480
  %482 = vmatmul.f32.gmra.mxu0 %v271
  %v483 = vpop.f32.mrf.mxu0
  %v484 = vadd.f32 %v84, %v483
  %485 = vmatmul.f32.gmra.mxu0 %v274
  %v486 = vpop.f32.mrf.mxu0
  %v487 = vadd.f32 %v84, %v486
  %488 = vmatmul.f32.gmra.mxu0 %v277
  %v489 = vpop.f32.mrf.mxu0
  %v490 = vadd.f32 %v84, %v489
  %491 = vdwg.mxu0
  %v492 = vpack.c.bf16 %v301, %v301
  %v493 = vpack.c.bf16 %v304, %v304
  %v494 = vpack.c.bf16 %v307, %v307
  %v495 = vpack.c.bf16 %v310, %v310
  %v496 = vpack.c.bf16 %v313, %v313
  %v497 = vpack.c.bf16 %v316, %v316
  %v498 = vpack.c.bf16 %v319, %v319
  %v499 = vpack.c.bf16 %v322, %v322
  %v500 = vpack.c.bf16 %v325, %v325
  %v501 = vpack.c.bf16 %v328, %v328
  %v502 = vpack.c.bf16 %v331, %v331
  %v503 = vpack.c.bf16 %v334, %v334
  %v504 = vpack.c.bf16 %v337, %v337
  %v505 = vpack.c.bf16 %v340, %v340
  %v506 = vpack.c.bf16 %v343, %v343
  %v507 = vpack.c.bf16 %v346, %v346
  %v508 = vpack.c.bf16 %v349, %v349
  %v509 = vpack.c.bf16 %v352, %v352
  %v510 = vpack.c.bf16 %v355, %v355
  %v511 = vpack.c.bf16 %v358, %v358
  %v512 = vpack.c.bf16 %v361, %v361
  %v513 = vpack.c.bf16 %v364, %v364
  %v514 = vpack.c.bf16 %v367, %v367
  %v515 = vpack.c.bf16 %v370, %v370
  %v516 = vpack.c.bf16 %v373, %v373
  %v517 = vpack.c.bf16 %v376, %v376
  %v518 = vpack.c.bf16 %v379, %v379
  %v519 = vpack.c.bf16 %v382, %v382
  %v520 = vpack.c.bf16 %v385, %v385
  %v521 = vpack.c.bf16 %v388, %v388
  %v522 = vpack.c.bf16 %v391, %v391
  %v523 = vpack.c.bf16 %v394, %v394
  %v524 = vpack.c.bf16 %v397, %v397
  %v525 = vpack.c.bf16 %v400, %v400
  %v526 = vpack.c.bf16 %v403, %v403
  %v527 = vpack.c.bf16 %v406, %v406
  %v528 = vpack.c.bf16 %v409, %v409
  %v529 = vpack.c.bf16 %v412, %v412
  %v530 = vpack.c.bf16 %v415, %v415
  %v531 = vpack.c.bf16 %v418, %v418
  %v532 = vpack.c.bf16 %v421, %v421
  %v533 = vpack.c.bf16 %v424, %v424
  %v534 = vpack.c.bf16 %v427, %v427
  %v535 = vpack.c.bf16 %v430, %v430
  %v536 = vpack.c.bf16 %v433, %v433
  %v537 = vpack.c.bf16 %v436, %v436
  %v538 = vpack.c.bf16 %v439, %v439
  %v539 = vpack.c.bf16 %v442, %v442
  %v540 = vpack.c.bf16 %v445, %v445
  %v541 = vpack.c.bf16 %v448, %v448
  %v542 = vpack.c.bf16 %v451, %v451
  %v543 = vpack.c.bf16 %v454, %v454
  %v544 = vpack.c.bf16 %v457, %v457
  %v545 = vpack.c.bf16 %v460, %v460
  %v546 = vpack.c.bf16 %v463, %v463
  %v547 = vpack.c.bf16 %v466, %v466
  %v548 = vpack.c.bf16 %v469, %v469
  %v549 = vpack.c.bf16 %v472, %v472
  %v550 = vpack.c.bf16 %v475, %v475
  %v551 = vpack.c.bf16 %v478, %v478
  %v552 = vpack.c.bf16 %v481, %v481
  %v553 = vpack.c.bf16 %v484, %v484
  %v554 = vpack.c.bf16 %v487, %v487
  %v555 = vpack.c.bf16 %v490, %v490
  %vm556 = vcmask 11264
  %557 = vst.msk [vmem:[%s3] sm:$0xf] %vm556, %v492
  %558 = vst.msk [vmem:[%s3 + $0x4] sm:$0xf] %vm556, %v493
  %559 = vst.msk [vmem:[%s3 + $0x8] sm:$0xf] %vm556, %v494
  %560 = vst.msk [vmem:[%s3 + $0xc] sm:$0xf] %vm556, %v495
  %561 = vst.msk [vmem:[%s3 + $0x10] sm:$0xf] %vm556, %v496
  %562 = vst.msk [vmem:[%s3 + $0x14] sm:$0xf] %vm556, %v497
  %563 = vst.msk [vmem:[%s3 + $0x18] sm:$0xf] %vm556, %v498
  %564 = vst.msk [vmem:[%s3 + $0x1c] sm:$0xf] %vm556, %v499
  %565 = vst.msk [vmem:[%s3 + $0x20] sm:$0xf] %vm556, %v500
  %566 = vst.msk [vmem:[%s3 + $0x24] sm:$0xf] %vm556, %v501
  %567 = vst.msk [vmem:[%s3 + $0x28] sm:$0xf] %vm556, %v502
  %568 = vst.msk [vmem:[%s3 + $0x2c] sm:$0xf] %vm556, %v503
  %569 = vst.msk [vmem:[%s3 + $0x30] sm:$0xf] %vm556, %v504
  %570 = vst.msk [vmem:[%s3 + $0x34] sm:$0xf] %vm556, %v505
  %571 = vst.msk [vmem:[%s3 + $0x38] sm:$0xf] %vm556, %v506
  %572 = vst.msk [vmem:[%s3 + $0x3c] sm:$0xf] %vm556, %v507
  %573 = vst.msk [vmem:[%s3 + $0x40] sm:$0xf] %vm556, %v508
  %574 = vst.msk [vmem:[%s3 + $0x44] sm:$0xf] %vm556, %v509
  %575 = vst.msk [vmem:[%s3 + $0x48] sm:$0xf] %vm556, %v510
  %576 = vst.msk [vmem:[%s3 + $0x4c] sm:$0xf] %vm556, %v511
  %577 = vst.msk [vmem:[%s3 + $0x50] sm:$0xf] %vm556, %v512
  %578 = vst.msk [vmem:[%s3 + $0x54] sm:$0xf] %vm556, %v513
  %579 = vst.msk [vmem:[%s3 + $0x58] sm:$0xf] %vm556, %v514
  %580 = vst.msk [vmem:[%s3 + $0x5c] sm:$0xf] %vm556, %v515
  %581 = vst.msk [vmem:[%s3 + $0x60] sm:$0xf] %vm556, %v516
  %582 = vst.msk [vmem:[%s3 + $0x64] sm:$0xf] %vm556, %v517
  %583 = vst.msk [vmem:[%s3 + $0x68] sm:$0xf] %vm556, %v518
  %584 = vst.msk [vmem:[%s3 + $0x6c] sm:$0xf] %vm556, %v519
  %585 = vst.msk [vmem:[%s3 + $0x70] sm:$0xf] %vm556, %v520
  %586 = vst.msk [vmem:[%s3 + $0x74] sm:$0xf] %vm556, %v521
  %587 = vst.msk [vmem:[%s3 + $0x78] sm:$0xf] %vm556, %v522
  %588 = vst.msk [vmem:[%s3 + $0x7c] sm:$0xf] %vm556, %v523
  %589 = vst.msk [vmem:[%s3 + $0x80] sm:$0xf] %vm556, %v524
  %590 = vst.msk [vmem:[%s3 + $0x84] sm:$0xf] %vm556, %v525
  %591 = vst.msk [vmem:[%s3 + $0x88] sm:$0xf] %vm556, %v526
  %592 = vst.msk [vmem:[%s3 + $0x8c] sm:$0xf] %vm556, %v527
  %593 = vst.msk [vmem:[%s3 + $0x90] sm:$0xf] %vm556, %v528
  %594 = vst.msk [vmem:[%s3 + $0x94] sm:$0xf] %vm556, %v529
  %595 = vst.msk [vmem:[%s3 + $0x98] sm:$0xf] %vm556, %v530
  %596 = vst.msk [vmem:[%s3 + $0x9c] sm:$0xf] %vm556, %v531
  %597 = vst.msk [vmem:[%s3 + $0xa0] sm:$0xf] %vm556, %v532
  %598 = vst.msk [vmem:[%s3 + $0xa4] sm:$0xf] %vm556, %v533
  %599 = vst.msk [vmem:[%s3 + $0xa8] sm:$0xf] %vm556, %v534
  %600 = vst.msk [vmem:[%s3 + $0xac] sm:$0xf] %vm556, %v535
  %601 = vst.msk [vmem:[%s3 + $0xb0] sm:$0xf] %vm556, %v536
  %602 = vst.msk [vmem:[%s3 + $0xb4] sm:$0xf] %vm556, %v537
  %603 = vst.msk [vmem:[%s3 + $0xb8] sm:$0xf] %vm556, %v538
  %604 = vst.msk [vmem:[%s3 + $0xbc] sm:$0xf] %vm556, %v539
  %605 = vst.msk [vmem:[%s3 + $0xc0] sm:$0xf] %vm556, %v540
  %606 = vst.msk [vmem:[%s3 + $0xc4] sm:$0xf] %vm556, %v541
  %607 = vst.msk [vmem:[%s3 + $0xc8] sm:$0xf] %vm556, %v542
  %608 = vst.msk [vmem:[%s3 + $0xcc] sm:$0xf] %vm556, %v543
  %609 = vst.msk [vmem:[%s3 + $0xd0] sm:$0xf] %vm556, %v544
  %610 = vst.msk [vmem:[%s3 + $0xd4] sm:$0xf] %vm556, %v545
  %611 = vst.msk [vmem:[%s3 + $0xd8] sm:$0xf] %vm556, %v546
  %612 = vst.msk [vmem:[%s3 + $0xdc] sm:$0xf] %vm556, %v547
  %613 = vst.msk [vmem:[%s3 + $0xe0] sm:$0xf] %vm556, %v548
  %614 = vst.msk [vmem:[%s3 + $0xe4] sm:$0xf] %vm556, %v549
  %615 = vst.msk [vmem:[%s3 + $0xe8] sm:$0xf] %vm556, %v550
  %616 = vst.msk [vmem:[%s3 + $0xec] sm:$0xf] %vm556, %v551
  %617 = vst.msk [vmem:[%s3 + $0xf0] sm:$0xf] %vm556, %v552
  %618 = vst.msk [vmem:[%s3 + $0xf4] sm:$0xf] %vm556, %v553
  %619 = vst.msk [vmem:[%s3 + $0xf8] sm:$0xf] %vm556, %v554
  %620 = vst.msk [vmem:[%s3 + $0xfc] sm:$0xf] %vm556, %v555
  %685 = vrot.lane.b32.xlu0 %v492, 126
  %v686 = vpop.permute.xlu0 %685
  %687 = vrot.lane.b32.xlu0 %v493, 126
  %v688 = vpop.permute.xlu0 %687
  %689 = vrot.lane.b32.xlu0 %v494, 126
  %v690 = vpop.permute.xlu0 %689
  %691 = vrot.lane.b32.xlu0 %v495, 126
  %v692 = vpop.permute.xlu0 %691
  %693 = vrot.lane.b32.xlu0 %v496, 126
  %v694 = vpop.permute.xlu0 %693
  %695 = vrot.lane.b32.xlu0 %v497, 126
  %v696 = vpop.permute.xlu0 %695
  %697 = vrot.lane.b32.xlu0 %v498, 126
  %v698 = vpop.permute.xlu0 %697
  %699 = vrot.lane.b32.xlu0 %v499, 126
  %v700 = vpop.permute.xlu0 %699
  %701 = vrot.lane.b32.xlu0 %v500, 126
  %v702 = vpop.permute.xlu0 %701
  %703 = vrot.lane.b32.xlu0 %v501, 126
  %v704 = vpop.permute.xlu0 %703
  %705 = vrot.lane.b32.xlu0 %v502, 126
  %v706 = vpop.permute.xlu0 %705
  %707 = vrot.lane.b32.xlu0 %v503, 126
  %v708 = vpop.permute.xlu0 %707
  %709 = vrot.lane.b32.xlu0 %v504, 126
  %v710 = vpop.permute.xlu0 %709
  %711 = vrot.lane.b32.xlu0 %v505, 126
  %v712 = vpop.permute.xlu0 %711
  %713 = vrot.lane.b32.xlu0 %v506, 126
  %v714 = vpop.permute.xlu0 %713
  %715 = vrot.lane.b32.xlu0 %v507, 126
  %v716 = vpop.permute.xlu0 %715
  %717 = vrot.lane.b32.xlu0 %v508, 126
  %v718 = vpop.permute.xlu0 %717
  %719 = vrot.lane.b32.xlu0 %v509, 126
  %v720 = vpop.permute.xlu0 %719
  %721 = vrot.lane.b32.xlu0 %v510, 126
  %v722 = vpop.permute.xlu0 %721
  %723 = vrot.lane.b32.xlu0 %v511, 126
  %v724 = vpop.permute.xlu0 %723
  %725 = vrot.lane.b32.xlu0 %v512, 126
  %v726 = vpop.permute.xlu0 %725
  %727 = vrot.lane.b32.xlu0 %v513, 126
  %v728 = vpop.permute.xlu0 %727
  %729 = vrot.lane.b32.xlu0 %v514, 126
  %v730 = vpop.permute.xlu0 %729
  %731 = vrot.lane.b32.xlu0 %v515, 126
  %v732 = vpop.permute.xlu0 %731
  %733 = vrot.lane.b32.xlu0 %v516, 126
  %v734 = vpop.permute.xlu0 %733
  %735 = vrot.lane.b32.xlu0 %v517, 126
  %v736 = vpop.permute.xlu0 %735
  %737 = vrot.lane.b32.xlu0 %v518, 126
  %v738 = vpop.permute.xlu0 %737
  %739 = vrot.lane.b32.xlu0 %v519, 126
  %v740 = vpop.permute.xlu0 %739
  %741 = vrot.lane.b32.xlu0 %v520, 126
  %v742 = vpop.permute.xlu0 %741
  %743 = vrot.lane.b32.xlu0 %v521, 126
  %v744 = vpop.permute.xlu0 %743
  %745 = vrot.lane.b32.xlu0 %v522, 126
  %v746 = vpop.permute.xlu0 %745
  %747 = vrot.lane.b32.xlu0 %v523, 126
  %v748 = vpop.permute.xlu0 %747
  %749 = vrot.lane.b32.xlu0 %v524, 126
  %v750 = vpop.permute.xlu0 %749
  %751 = vrot.lane.b32.xlu0 %v525, 126
  %v752 = vpop.permute.xlu0 %751
  %753 = vrot.lane.b32.xlu0 %v526, 126
  %v754 = vpop.permute.xlu0 %753
  %755 = vrot.lane.b32.xlu0 %v527, 126
  %v756 = vpop.permute.xlu0 %755
  %757 = vrot.lane.b32.xlu0 %v528, 126
  %v758 = vpop.permute.xlu0 %757
  %759 = vrot.lane.b32.xlu0 %v529, 126
  %v760 = vpop.permute.xlu0 %759
  %761 = vrot.lane.b32.xlu0 %v530, 126
  %v762 = vpop.permute.xlu0 %761
  %763 = vrot.lane.b32.xlu0 %v531, 126
  %v764 = vpop.permute.xlu0 %763
  %765 = vrot.lane.b32.xlu0 %v532, 126
  %v766 = vpop.permute.xlu0 %765
  %767 = vrot.lane.b32.xlu0 %v533, 126
  %v768 = vpop.permute.xlu0 %767
  %769 = vrot.lane.b32.xlu0 %v534, 126
  %v770 = vpop.permute.xlu0 %769
  %771 = vrot.lane.b32.xlu0 %v535, 126
  %v772 = vpop.permute.xlu0 %771
  %773 = vrot.lane.b32.xlu0 %v536, 126
  %v774 = vpop.permute.xlu0 %773
  %775 = vrot.lane.b32.xlu0 %v537, 126
  %v776 = vpop.permute.xlu0 %775
  %777 = vrot.lane.b32.xlu0 %v538, 126
  %v778 = vpop.permute.xlu0 %777
  %779 = vrot.lane.b32.xlu0 %v539, 126
  %v780 = vpop.permute.xlu0 %779
  %781 = vrot.lane.b32.xlu0 %v540, 126
  %v782 = vpop.permute.xlu0 %781
  %783 = vrot.lane.b32.xlu0 %v541, 126
  %v784 = vpop.permute.xlu0 %783
  %785 = vrot.lane.b32.xlu0 %v542, 126
  %v786 = vpop.permute.xlu0 %785
  %787 = vrot.lane.b32.xlu0 %v543, 126
  %v788 = vpop.permute.xlu0 %787
  %789 = vrot.lane.b32.xlu0 %v544, 126
  %v790 = vpop.permute.xlu0 %789
  %791 = vrot.lane.b32.xlu0 %v545, 126
  %v792 = vpop.permute.xlu0 %791
  %793 = vrot.lane.b32.xlu0 %v546, 126
  %v794 = vpop.permute.xlu0 %793
  %795 = vrot.lane.b32.xlu0 %v547, 126
  %v796 = vpop.permute.xlu0 %795
  %797 = vrot.lane.b32.xlu0 %v548, 126
  %v798 = vpop.permute.xlu0 %797
  %799 = vrot.lane.b32.xlu0 %v549, 126
  %v800 = vpop.permute.xlu0 %799
  %801 = vrot.lane.b32.xlu0 %v550, 126
  %v802 = vpop.permute.xlu0 %801
  %803 = vrot.lane.b32.xlu0 %v551, 126
  %v804 = vpop.permute.xlu0 %803
  %805 = vrot.lane.b32.xlu0 %v552, 126
  %v806 = vpop.permute.xlu0 %805
  %807 = vrot.lane.b32.xlu0 %v553, 126
  %v808 = vpop.permute.xlu0 %807
  %809 = vrot.lane.b32.xlu0 %v554, 126
  %v810 = vpop.permute.xlu0 %809
  %811 = vrot.lane.b32.xlu0 %v555, 126
  %v812 = vpop.permute.xlu0 %811
  %877 = vst.msk [vmem:[%s4] sm:$0xf] %vm556, %v686
  %878 = vst.msk [vmem:[%s4 + $0x4] sm:$0xf] %vm556, %v688
  %879 = vst.msk [vmem:[%s4 + $0x8] sm:$0xf] %vm556, %v690
  %880 = vst.msk [vmem:[%s4 + $0xc] sm:$0xf] %vm556, %v692
  %881 = vst.msk [vmem:[%s4 + $0x10] sm:$0xf] %vm556, %v694
  %882 = vst.msk [vmem:[%s4 + $0x14] sm:$0xf] %vm556, %v696
  %883 = vst.msk [vmem:[%s4 + $0x18] sm:$0xf] %vm556, %v698
  %884 = vst.msk [vmem:[%s4 + $0x1c] sm:$0xf] %vm556, %v700
  %885 = vst.msk [vmem:[%s4 + $0x20] sm:$0xf] %vm556, %v702
  %886 = vst.msk [vmem:[%s4 + $0x24] sm:$0xf] %vm556, %v704
  %887 = vst.msk [vmem:[%s4 + $0x28] sm:$0xf] %vm556, %v706
  %888 = vst.msk [vmem:[%s4 + $0x2c] sm:$0xf] %vm556, %v708
  %889 = vst.msk [vmem:[%s4 + $0x30] sm:$0xf] %vm556, %v710
  %890 = vst.msk [vmem:[%s4 + $0x34] sm:$0xf] %vm556, %v712
  %891 = vst.msk [vmem:[%s4 + $0x38] sm:$0xf] %vm556, %v714
  %892 = vst.msk [vmem:[%s4 + $0x3c] sm:$0xf] %vm556, %v716
  %893 = vst.msk [vmem:[%s4 + $0x40] sm:$0xf] %vm556, %v718
  %894 = vst.msk [vmem:[%s4 + $0x44] sm:$0xf] %vm556, %v720
  %895 = vst.msk [vmem:[%s4 + $0x48] sm:$0xf] %vm556, %v722
  %896 = vst.msk [vmem:[%s4 + $0x4c] sm:$0xf] %vm556, %v724
  %897 = vst.msk [vmem:[%s4 + $0x50] sm:$0xf] %vm556, %v726
  %898 = vst.msk [vmem:[%s4 + $0x54] sm:$0xf] %vm556, %v728
  %899 = vst.msk [vmem:[%s4 + $0x58] sm:$0xf] %vm556, %v730
  %900 = vst.msk [vmem:[%s4 + $0x5c] sm:$0xf] %vm556, %v732
  %901 = vst.msk [vmem:[%s4 + $0x60] sm:$0xf] %vm556, %v734
  %902 = vst.msk [vmem:[%s4 + $0x64] sm:$0xf] %vm556, %v736
  %903 = vst.msk [vmem:[%s4 + $0x68] sm:$0xf] %vm556, %v738
  %904 = vst.msk [vmem:[%s4 + $0x6c] sm:$0xf] %vm556, %v740
  %905 = vst.msk [vmem:[%s4 + $0x70] sm:$0xf] %vm556, %v742
  %906 = vst.msk [vmem:[%s4 + $0x74] sm:$0xf] %vm556, %v744
  %907 = vst.msk [vmem:[%s4 + $0x78] sm:$0xf] %vm556, %v746
  %908 = vst.msk [vmem:[%s4 + $0x7c] sm:$0xf] %vm556, %v748
  %909 = vst.msk [vmem:[%s4 + $0x80] sm:$0xf] %vm556, %v750
  %910 = vst.msk [vmem:[%s4 + $0x84] sm:$0xf] %vm556, %v752
  %911 = vst.msk [vmem:[%s4 + $0x88] sm:$0xf] %vm556, %v754
  %912 = vst.msk [vmem:[%s4 + $0x8c] sm:$0xf] %vm556, %v756
  %913 = vst.msk [vmem:[%s4 + $0x90] sm:$0xf] %vm556, %v758
  %914 = vst.msk [vmem:[%s4 + $0x94] sm:$0xf] %vm556, %v760
  %915 = vst.msk [vmem:[%s4 + $0x98] sm:$0xf] %vm556, %v762
  %916 = vst.msk [vmem:[%s4 + $0x9c] sm:$0xf] %vm556, %v764
  %917 = vst.msk [vmem:[%s4 + $0xa0] sm:$0xf] %vm556, %v766
  %918 = vst.msk [vmem:[%s4 + $0xa4] sm:$0xf] %vm556, %v768
  %919 = vst.msk [vmem:[%s4 + $0xa8] sm:$0xf] %vm556, %v770
  %920 = vst.msk [vmem:[%s4 + $0xac] sm:$0xf] %vm556, %v772
  %921 = vst.msk [vmem:[%s4 + $0xb0] sm:$0xf] %vm556, %v774
  %922 = vst.msk [vmem:[%s4 + $0xb4] sm:$0xf] %vm556, %v776
  %923 = vst.msk [vmem:[%s4 + $0xb8] sm:$0xf] %vm556, %v778
  %924 = vst.msk [vmem:[%s4 + $0xbc] sm:$0xf] %vm556, %v780
  %925 = vst.msk [vmem:[%s4 + $0xc0] sm:$0xf] %vm556, %v782
  %926 = vst.msk [vmem:[%s4 + $0xc4] sm:$0xf] %vm556, %v784
  %927 = vst.msk [vmem:[%s4 + $0xc8] sm:$0xf] %vm556, %v786
  %928 = vst.msk [vmem:[%s4 + $0xcc] sm:$0xf] %vm556, %v788
  %929 = vst.msk [vmem:[%s4 + $0xd0] sm:$0xf] %vm556, %v790
  %930 = vst.msk [vmem:[%s4 + $0xd4] sm:$0xf] %vm556, %v792
  %931 = vst.msk [vmem:[%s4 + $0xd8] sm:$0xf] %vm556, %v794
  %932 = vst.msk [vmem:[%s4 + $0xdc] sm:$0xf] %vm556, %v796
  %933 = vst.msk [vmem:[%s4 + $0xe0] sm:$0xf] %vm556, %v798
  %934 = vst.msk [vmem:[%s4 + $0xe4] sm:$0xf] %vm556, %v800
  %935 = vst.msk [vmem:[%s4 + $0xe8] sm:$0xf] %vm556, %v802
  %936 = vst.msk [vmem:[%s4 + $0xec] sm:$0xf] %vm556, %v804
  %937 = vst.msk [vmem:[%s4 + $0xf0] sm:$0xf] %vm556, %v806
  %938 = vst.msk [vmem:[%s4 + $0xf4] sm:$0xf] %vm556, %v808
  %939 = vst.msk [vmem:[%s4 + $0xf8] sm:$0xf] %vm556, %v810
  %940 = vst.msk [vmem:[%s4 + $0xfc] sm:$0xf] %vm556, %v812
  %941 = vrot.lane.b32.xlu0 %v492, 124
  %v942 = vpop.permute.xlu0 %941
  %943 = vrot.lane.b32.xlu0 %v493, 124
  %v944 = vpop.permute.xlu0 %943
  %945 = vrot.lane.b32.xlu0 %v494, 124
  %v946 = vpop.permute.xlu0 %945
  %947 = vrot.lane.b32.xlu0 %v495, 124
  %v948 = vpop.permute.xlu0 %947
  %949 = vrot.lane.b32.xlu0 %v496, 124
  %v950 = vpop.permute.xlu0 %949
  %951 = vrot.lane.b32.xlu0 %v497, 124
  %v952 = vpop.permute.xlu0 %951
  %953 = vrot.lane.b32.xlu0 %v498, 124
  %v954 = vpop.permute.xlu0 %953
  %955 = vrot.lane.b32.xlu0 %v499, 124
  %v956 = vpop.permute.xlu0 %955
  %957 = vrot.lane.b32.xlu0 %v500, 124
  %v958 = vpop.permute.xlu0 %957
  %959 = vrot.lane.b32.xlu0 %v501, 124
  %v960 = vpop.permute.xlu0 %959
  %961 = vrot.lane.b32.xlu0 %v502, 124
  %v962 = vpop.permute.xlu0 %961
  %963 = vrot.lane.b32.xlu0 %v503, 124
  %v964 = vpop.permute.xlu0 %963
  %965 = vrot.lane.b32.xlu0 %v504, 124
  %v966 = vpop.permute.xlu0 %965
  %967 = vrot.lane.b32.xlu0 %v505, 124
  %v968 = vpop.permute.xlu0 %967
  %969 = vrot.lane.b32.xlu0 %v506, 124
  %v970 = vpop.permute.xlu0 %969
  %971 = vrot.lane.b32.xlu0 %v507, 124
  %v972 = vpop.permute.xlu0 %971
  %973 = vrot.lane.b32.xlu0 %v508, 124
  %v974 = vpop.permute.xlu0 %973
  %975 = vrot.lane.b32.xlu0 %v509, 124
  %v976 = vpop.permute.xlu0 %975
  %977 = vrot.lane.b32.xlu0 %v510, 124
  %v978 = vpop.permute.xlu0 %977
  %979 = vrot.lane.b32.xlu0 %v511, 124
  %v980 = vpop.permute.xlu0 %979
  %981 = vrot.lane.b32.xlu0 %v512, 124
  %v982 = vpop.permute.xlu0 %981
  %983 = vrot.lane.b32.xlu0 %v513, 124
  %v984 = vpop.permute.xlu0 %983
  %985 = vrot.lane.b32.xlu0 %v514, 124
  %v986 = vpop.permute.xlu0 %985
  %987 = vrot.lane.b32.xlu0 %v515, 124
  %v988 = vpop.permute.xlu0 %987
  %989 = vrot.lane.b32.xlu0 %v516, 124
  %v990 = vpop.permute.xlu0 %989
  %991 = vrot.lane.b32.xlu0 %v517, 124
  %v992 = vpop.permute.xlu0 %991
  %993 = vrot.lane.b32.xlu0 %v518, 124
  %v994 = vpop.permute.xlu0 %993
  %995 = vrot.lane.b32.xlu0 %v519, 124
  %v996 = vpop.permute.xlu0 %995
  %997 = vrot.lane.b32.xlu0 %v520, 124
  %v998 = vpop.permute.xlu0 %997
  %999 = vrot.lane.b32.xlu0 %v521, 124
  %v1000 = vpop.permute.xlu0 %999
  %1001 = vrot.lane.b32.xlu0 %v522, 124
  %v1002 = vpop.permute.xlu0 %1001
  %1003 = vrot.lane.b32.xlu0 %v523, 124
  %v1004 = vpop.permute.xlu0 %1003
  %1005 = vrot.lane.b32.xlu0 %v524, 124
  %v1006 = vpop.permute.xlu0 %1005
  %1007 = vrot.lane.b32.xlu0 %v525, 124
  %v1008 = vpop.permute.xlu0 %1007
  %1009 = vrot.lane.b32.xlu0 %v526, 124
  %v1010 = vpop.permute.xlu0 %1009
  %1011 = vrot.lane.b32.xlu0 %v527, 124
  %v1012 = vpop.permute.xlu0 %1011
  %1013 = vrot.lane.b32.xlu0 %v528, 124
  %v1014 = vpop.permute.xlu0 %1013
  %1015 = vrot.lane.b32.xlu0 %v529, 124
  %v1016 = vpop.permute.xlu0 %1015
  %1017 = vrot.lane.b32.xlu0 %v530, 124
  %v1018 = vpop.permute.xlu0 %1017
  %1019 = vrot.lane.b32.xlu0 %v531, 124
  %v1020 = vpop.permute.xlu0 %1019
  %1021 = vrot.lane.b32.xlu0 %v532, 124
  %v1022 = vpop.permute.xlu0 %1021
  %1023 = vrot.lane.b32.xlu0 %v533, 124
  %v1024 = vpop.permute.xlu0 %1023
  %1025 = vrot.lane.b32.xlu0 %v534, 124
  %v1026 = vpop.permute.xlu0 %1025
  %1027 = vrot.lane.b32.xlu0 %v535, 124
  %v1028 = vpop.permute.xlu0 %1027
  %1029 = vrot.lane.b32.xlu0 %v536, 124
  %v1030 = vpop.permute.xlu0 %1029
  %1031 = vrot.lane.b32.xlu0 %v537, 124
  %v1032 = vpop.permute.xlu0 %1031
  %1033 = vrot.lane.b32.xlu0 %v538, 124
  %v1034 = vpop.permute.xlu0 %1033
  %1035 = vrot.lane.b32.xlu0 %v539, 124
  %v1036 = vpop.permute.xlu0 %1035
  %1037 = vrot.lane.b32.xlu0 %v540, 124
  %v1038 = vpop.permute.xlu0 %1037
  %1039 = vrot.lane.b32.xlu0 %v541, 124
  %v1040 = vpop.permute.xlu0 %1039
  %1041 = vrot.lane.b32.xlu0 %v542, 124
  %v1042 = vpop.permute.xlu0 %1041
  %1043 = vrot.lane.b32.xlu0 %v543, 124
  %v1044 = vpop.permute.xlu0 %1043
  %1045 = vrot.lane.b32.xlu0 %v544, 124
  %v1046 = vpop.permute.xlu0 %1045
  %1047 = vrot.lane.b32.xlu0 %v545, 124
  %v1048 = vpop.permute.xlu0 %1047
  %1049 = vrot.lane.b32.xlu0 %v546, 124
  %v1050 = vpop.permute.xlu0 %1049
  %1051 = vrot.lane.b32.xlu0 %v547, 124
  %v1052 = vpop.permute.xlu0 %1051
  %1053 = vrot.lane.b32.xlu0 %v548, 124
  %v1054 = vpop.permute.xlu0 %1053
  %1055 = vrot.lane.b32.xlu0 %v549, 124
  %v1056 = vpop.permute.xlu0 %1055
  %1057 = vrot.lane.b32.xlu0 %v550, 124
  %v1058 = vpop.permute.xlu0 %1057
  %1059 = vrot.lane.b32.xlu0 %v551, 124
  %v1060 = vpop.permute.xlu0 %1059
  %1061 = vrot.lane.b32.xlu0 %v552, 124
  %v1062 = vpop.permute.xlu0 %1061
  %1063 = vrot.lane.b32.xlu0 %v553, 124
  %v1064 = vpop.permute.xlu0 %1063
  %1065 = vrot.lane.b32.xlu0 %v554, 124
  %v1066 = vpop.permute.xlu0 %1065
  %1067 = vrot.lane.b32.xlu0 %v555, 124
  %v1068 = vpop.permute.xlu0 %1067
  %vm1133 = vcmask 27648
  %1134 = vst.msk [vmem:[%s5] sm:$0xf] %vm1133, %v942
  %1135 = vst.msk [vmem:[%s5 + $0x4] sm:$0xf] %vm1133, %v944
  %1136 = vst.msk [vmem:[%s5 + $0x8] sm:$0xf] %vm1133, %v946
  %1137 = vst.msk [vmem:[%s5 + $0xc] sm:$0xf] %vm1133, %v948
  %1138 = vst.msk [vmem:[%s5 + $0x10] sm:$0xf] %vm1133, %v950
  %1139 = vst.msk [vmem:[%s5 + $0x14] sm:$0xf] %vm1133, %v952
  %1140 = vst.msk [vmem:[%s5 + $0x18] sm:$0xf] %vm1133, %v954
  %1141 = vst.msk [vmem:[%s5 + $0x1c] sm:$0xf] %vm1133, %v956
  %1142 = vst.msk [vmem:[%s5 + $0x20] sm:$0xf] %vm1133, %v958
  %1143 = vst.msk [vmem:[%s5 + $0x24] sm:$0xf] %vm1133, %v960
  %1144 = vst.msk [vmem:[%s5 + $0x28] sm:$0xf] %vm1133, %v962
  %1145 = vst.msk [vmem:[%s5 + $0x2c] sm:$0xf] %vm1133, %v964
  %1146 = vst.msk [vmem:[%s5 + $0x30] sm:$0xf] %vm1133, %v966
  %1147 = vst.msk [vmem:[%s5 + $0x34] sm:$0xf] %vm1133, %v968
  %1148 = vst.msk [vmem:[%s5 + $0x38] sm:$0xf] %vm1133, %v970
  %1149 = vst.msk [vmem:[%s5 + $0x3c] sm:$0xf] %vm1133, %v972
  %1150 = vst.msk [vmem:[%s5 + $0x40] sm:$0xf] %vm1133, %v974
  %1151 = vst.msk [vmem:[%s5 + $0x44] sm:$0xf] %vm1133, %v976
  %1152 = vst.msk [vmem:[%s5 + $0x48] sm:$0xf] %vm1133, %v978
  %1153 = vst.msk [vmem:[%s5 + $0x4c] sm:$0xf] %vm1133, %v980
  %1154 = vst.msk [vmem:[%s5 + $0x50] sm:$0xf] %vm1133, %v982
  %1155 = vst.msk [vmem:[%s5 + $0x54] sm:$0xf] %vm1133, %v984
  %1156 = vst.msk [vmem:[%s5 + $0x58] sm:$0xf] %vm1133, %v986
  %1157 = vst.msk [vmem:[%s5 + $0x5c] sm:$0xf] %vm1133, %v988
  %1158 = vst.msk [vmem:[%s5 + $0x60] sm:$0xf] %vm1133, %v990
  %1159 = vst.msk [vmem:[%s5 + $0x64] sm:$0xf] %vm1133, %v992
  %1160 = vst.msk [vmem:[%s5 + $0x68] sm:$0xf] %vm1133, %v994
  %1161 = vst.msk [vmem:[%s5 + $0x6c] sm:$0xf] %vm1133, %v996
  %1162 = vst.msk [vmem:[%s5 + $0x70] sm:$0xf] %vm1133, %v998
  %1163 = vst.msk [vmem:[%s5 + $0x74] sm:$0xf] %vm1133, %v1000
  %1164 = vst.msk [vmem:[%s5 + $0x78] sm:$0xf] %vm1133, %v1002
  %1165 = vst.msk [vmem:[%s5 + $0x7c] sm:$0xf] %vm1133, %v1004
  %1166 = vst.msk [vmem:[%s5 + $0x80] sm:$0xf] %vm1133, %v1006
  %1167 = vst.msk [vmem:[%s5 + $0x84] sm:$0xf] %vm1133, %v1008
  %1168 = vst.msk [vmem:[%s5 + $0x88] sm:$0xf] %vm1133, %v1010
  %1169 = vst.msk [vmem:[%s5 + $0x8c] sm:$0xf] %vm1133, %v1012
  %1170 = vst.msk [vmem:[%s5 + $0x90] sm:$0xf] %vm1133, %v1014
  %1171 = vst.msk [vmem:[%s5 + $0x94] sm:$0xf] %vm1133, %v1016
  %1172 = vst.msk [vmem:[%s5 + $0x98] sm:$0xf] %vm1133, %v1018
  %1173 = vst.msk [vmem:[%s5 + $0x9c] sm:$0xf] %vm1133, %v1020
  %1174 = vst.msk [vmem:[%s5 + $0xa0] sm:$0xf] %vm1133, %v1022
  %1175 = vst.msk [vmem:[%s5 + $0xa4] sm:$0xf] %vm1133, %v1024
  %1176 = vst.msk [vmem:[%s5 + $0xa8] sm:$0xf] %vm1133, %v1026
  %1177 = vst.msk [vmem:[%s5 + $0xac] sm:$0xf] %vm1133, %v1028
  %1178 = vst.msk [vmem:[%s5 + $0xb0] sm:$0xf] %vm1133, %v1030
  %1179 = vst.msk [vmem:[%s5 + $0xb4] sm:$0xf] %vm1133, %v1032
  %1180 = vst.msk [vmem:[%s5 + $0xb8] sm:$0xf] %vm1133, %v1034
  %1181 = vst.msk [vmem:[%s5 + $0xbc] sm:$0xf] %vm1133, %v1036
  %1182 = vst.msk [vmem:[%s5 + $0xc0] sm:$0xf] %vm1133, %v1038
  %1183 = vst.msk [vmem:[%s5 + $0xc4] sm:$0xf] %vm1133, %v1040
  %1184 = vst.msk [vmem:[%s5 + $0xc8] sm:$0xf] %vm1133, %v1042
  %1185 = vst.msk [vmem:[%s5 + $0xcc] sm:$0xf] %vm1133, %v1044
  %1186 = vst.msk [vmem:[%s5 + $0xd0] sm:$0xf] %vm1133, %v1046
  %1187 = vst.msk [vmem:[%s5 + $0xd4] sm:$0xf] %vm1133, %v1048
  %1188 = vst.msk [vmem:[%s5 + $0xd8] sm:$0xf] %vm1133, %v1050
  %1189 = vst.msk [vmem:[%s5 + $0xdc] sm:$0xf] %vm1133, %v1052
  %1190 = vst.msk [vmem:[%s5 + $0xe0] sm:$0xf] %vm1133, %v1054
  %1191 = vst.msk [vmem:[%s5 + $0xe4] sm:$0xf] %vm1133, %v1056
  %1192 = vst.msk [vmem:[%s5 + $0xe8] sm:$0xf] %vm1133, %v1058
  %1193 = vst.msk [vmem:[%s5 + $0xec] sm:$0xf] %vm1133, %v1060
  %1194 = vst.msk [vmem:[%s5 + $0xf0] sm:$0xf] %vm1133, %v1062
  %1195 = vst.msk [vmem:[%s5 + $0xf4] sm:$0xf] %vm1133, %v1064
  %1196 = vst.msk [vmem:[%s5 + $0xf8] sm:$0xf] %vm1133, %v1066
  %1197 = vst.msk [vmem:[%s5 + $0xfc] sm:$0xf] %vm1133, %v1068
  // Predicated region
  $region14: #{tpu_custom_call.1} parent=0 // pred_check
    _
  $region15: #{tpu_custom_call.1} parent=0 // pred_check_branch
    %1199 = sbr.rel (0) target = $region17
  $region16: #{tpu_custom_call.1} parent=0 // pred_region
    _
  $region17: #{tpu_custom_call.1} parent=0 // pred_fallthru
    _
  // Predicated region
  $region18: #{tpu_custom_call.1} parent=0 // pred_check
    _
  $region19: #{tpu_custom_call.1} parent=0 // pred_check_branch
    %1201 = sbr.rel (0) target = $region21
  $region20: #{tpu_custom_call.1} parent=0 // pred_region
    _
  $region21: #{tpu_custom_call.1} parent=0 // pred_fallthru
    _
  // Predicated region
  $region22: #{tpu_custom_call.1} parent=0 // pred_check
    _
  $region23: #{tpu_custom_call.1} parent=0 // pred_check_branch
    %1203 = sbr.rel (0) target = $region25
  $region24: #{tpu_custom_call.1} parent=0 // pred_region
    _
  $region25: #{tpu_custom_call.1} parent=0 // pred_fallthru
    _
  // Predicated region
  $region26: #{tpu_custom_call.1} parent=0 // pred_check
    _
  $region27: #{tpu_custom_call.1} parent=0 // pred_check_branch
    %1205 = sbr.rel (0) target = $region29
  $region28: #{tpu_custom_call.1} parent=0 // pred_region
    _
  $region29: #{tpu_custom_call.1} parent=0 // pred_fallthru
    _
  // Predicated region
  $region30: #{tpu_custom_call.1} parent=0 // pred_check
    _
  $region31: #{tpu_custom_call.1} parent=0 // pred_check_branch
    %1207 = sbr.rel (0) target = $region33
  $region32: #{tpu_custom_call.1} parent=0 // pred_region
    _
  $region33: #{tpu_custom_call.1} parent=0 // pred_fallthru
    _
  // Predicated region
  $region34: #{tpu_custom_call.1} parent=0 // pred_check
    _
  $region35: #{tpu_custom_call.1} parent=0 // pred_check_branch
    %1209 = sbr.rel (0) target = $region37
  $region36: #{tpu_custom_call.1} parent=0 // pred_region
    _
  $region37: #{tpu_custom_call.1} parent=0 // pred_fallthru
    _

</llo_original>
